<compile_context>
chip_gen: v7x
topology: tpu7x:2x2x1
jax: 0.10.0
libtpu: 0.0.40
codegen_flags: <defaults>
</compile_context>

<pallas_src>
import jax
import jax.numpy as jnp
import numpy as np
from jax import lax
from jax.experimental import pallas as pl
from jax.experimental.pallas import tpu as pltpu

_BN_EPS = 1e-5
_GC = 16     # conv2 output channels contracted per fc matmul group (power of 2)


# -----------------------------------------------------------------------------
# Fused kernel: [conv1x1 + BN(eval) + ReLU] x2  +  final Linear, one batch elem.
# -----------------------------------------------------------------------------
def _feature_flat_kernel(x_ref, w1_ref, t1_ref, w2_ref, t2_ref, wbig_ref,
                         fcb_ref, o_ref):
    cdt = w1_ref.dtype                      # MXU input dtype (bf16 or f32)
    out_dim = fcb_ref.shape[-1]             # 32
    c2 = w2_ref.shape[0]                    # 64
    gc = _GC
    ng = c2 // gc

    # ---- conv stack: 1x1 convs are channel matmuls, f32 accumulation --------
    x = x_ref[0].astype(cdt)                                          # (C, HW)
    h1 = jnp.dot(w1_ref[...], x, preferred_element_type=jnp.float32)
    h1 = jnp.maximum(h1 + t1_ref[...], 0.0)                           # (C1, HW)
    h2 = jnp.dot(w2_ref[...], h1.astype(cdt),
                 preferred_element_type=jnp.float32)
    h2 = jnp.maximum(h2 + t2_ref[...], 0.0).astype(cdt)               # (C2, HW)

    # ---- final Linear: out[o] = sum_{c,s} h2[c,s] * wbig[s, c*OUT + o] ------
    # Per channel group g (gc channels): one (gc,HW)@(HW,gc*OUT) matmul, then
    # keep the block-diagonal (row c_local <-> lane block c_local) and reduce.
    row = lax.broadcasted_iota(jnp.int32, (gc, gc * out_dim), 0)
    col = lax.broadcasted_iota(jnp.int32, (gc, gc * out_dim), 1)
    keep = (col >= row * out_dim) & (col < (row + 1) * out_dim)       # built once

    acc = fcb_ref[...].astype(jnp.float32)                            # (1, OUT)
    for g in range(ng):                                               # static unroll
        lhs = h2[g * gc:(g + 1) * gc, :]                              # (gc, HW)
        rhs = wbig_ref[:, g * gc * out_dim:(g + 1) * gc * out_dim]    # (HW, gc*OUT)
        r = jnp.dot(lhs, rhs, preferred_element_type=jnp.float32)     # (gc, gc*OUT)
        y = jnp.sum(jnp.where(keep, r, 0.0), axis=0, keepdims=True)   # (1, gc*OUT)
        width = gc * out_dim
        while width > out_dim:            # lane halving fold over the gc channels
            half = width // 2
            y = y[:, :half] + y[:, half:width]
            width = half
        acc = acc + y                                                 # (1, OUT)
    o_ref[0] = acc


# -----------------------------------------------------------------------------
# Wrapper around pallas_call
# -----------------------------------------------------------------------------
def feature_flat_forward(prep, x_nchw):
    """Forward pass of FeatureFlat. x_nchw: (B, C, H, W) float32."""
    B, C, H, W = x_nchw.shape
    HW = H * W
    w1s, t1, w2s, t2, wbig, fcb = (prep["w1s"], prep["t1"], prep["w2s"],
                                   prep["t2"], prep["wbig"], prep["fcb"])
    C1, Cw = w1s.shape
    C2 = w2s.shape[0]
    OUT = fcb.shape[-1]
    assert Cw == C and wbig.shape == (HW, C2 * OUT)
    assert C2 % _GC == 0 and (_GC & (_GC - 1)) == 0

    x_r = x_nchw.reshape(B, C, HW)          # free view; no NCHW->NHWC transpose

    flops = 2 * B * HW * (C * C1 + C1 * C2 + C2 * OUT)
    bytes_accessed = int(
        x_r.size * x_r.dtype.itemsize
        + w1s.size * w1s.dtype.itemsize + w2s.size * w2s.dtype.itemsize
        + wbig.size * wbig.dtype.itemsize           # fetched once (VMEM-resident)
        + (t1.size + t2.size + fcb.size) * 4
        + B * OUT * 4)

    out3 = pl.pallas_call(
        _feature_flat_kernel,
        out_shape=jax.ShapeDtypeStruct((B, 1, OUT), jnp.float32),
        grid_spec=pltpu.PrefetchScalarGridSpec(
            num_scalar_prefetch=0,
            grid=(B,),
            in_specs=[
                pl.BlockSpec((1, C, HW), lambda b: (b, 0, 0)),    # x, per batch elem
                pl.BlockSpec((C1, C), lambda b: (0, 0)),          # conv1 w * bn scale
                pl.BlockSpec((C1, 1), lambda b: (0, 0)),          # conv1 shift
                pl.BlockSpec((C2, C1), lambda b: (0, 0)),         # conv2 w * bn scale
                pl.BlockSpec((C2, 1), lambda b: (0, 0)),          # conv2 shift
                pl.BlockSpec((HW, C2 * OUT), lambda b: (0, 0)),   # fc weight, resident
                pl.BlockSpec((1, OUT), lambda b: (0, 0)),         # fc bias
            ],
            out_specs=pl.BlockSpec((1, 1, OUT), lambda b: (b, 0, 0)),
        ),
        compiler_params=pltpu.CompilerParams(
            dimension_semantics=("parallel",),
            vmem_limit_bytes=32 * 1024 * 1024),
        cost_estimate=pl.CostEstimate(flops=flops, transcendentals=0,
                                      bytes_accessed=bytes_accessed),
    )(x_r, w1s, t1, w2s, t2, wbig, fcb)
    return out3.reshape(B, OUT)


# -----------------------------------------------------------------------------
# One-time parameter preparation: BN-eval fold into conv weights, fc weight
# rearranged to (HW, C2*OUT) (natural K-on-sublanes / lane-dense N), dtype cast.
# -----------------------------------------------------------------------------
def prepare_params(params, spatial, compute_dtype=jnp.bfloat16):
    def fold(w, conv_b, gamma, beta, mean, var):
        scale = gamma / jnp.sqrt(var + _BN_EPS)                 # fold kept in f32
        w_s = (w * scale[:, None]).astype(compute_dtype)        # scale -> weight rows
        shift = ((conv_b - mean) * scale + beta)[:, None]       # (Cout, 1)
        return w_s, shift.astype(jnp.float32)

    w1s, t1 = fold(params["conv1_w"], params["conv1_b"], params["bn1_gamma"],
                   params["bn1_beta"], params["bn1_mean"], params["bn1_var"])
    w2s, t2 = fold(params["conv2_w"], params["conv2_b"], params["bn2_gamma"],
                   params["bn2_beta"], params["bn2_mean"], params["bn2_var"])

    hw = spatial * spatial
    out_dim, flat = params["fc_w"].shape
    c2 = params["conv2_w"].shape[0]
    assert flat == c2 * hw
    # torch flatten index f = c*HW + s  ->  wbig[s, c*OUT + o] = fc_w[o, c*HW + s]
    wbig = (params["fc_w"].reshape(out_dim, c2, hw)
            .transpose(2, 1, 0).reshape(hw, c2 * out_dim).astype(compute_dtype))
    fcb = params["fc_b"].reshape(1, out_dim).astype(jnp.float32)
    return {"w1s": w1s, "t1": t1, "w2s": w2s, "t2": t2, "wbig": wbig, "fcb": fcb}


# -----------------------------------------------------------------------------
# Synthetic parameters matching FeatureFlat.__init__ shapes
# -----------------------------------------------------------------------------
def init_feature_flat_params(key, c_in, spatial, output_size):
    channels = [256, 64]
    keys = jax.random.split(key, 12)
    p = {}
    p["conv1_w"] = 0.1 * jax.random.normal(keys[0], (channels[0], c_in), jnp.float32)
    p["conv1_b"] = 0.1 * jax.random.normal(keys[1], (channels[0],), jnp.float32)
    p["bn1_gamma"] = 1.0 + 0.1 * jax.random.normal(keys[2], (channels[0],), jnp.float32)
    p["bn1_beta"] = 0.1 * jax.random.normal(keys[3], (channels[0],), jnp.float32)
    p["bn1_mean"] = 0.05 * jax.random.normal(keys[4], (channels[0],), jnp.float32)
    p["bn1_var"] = jax.random.uniform(keys[5], (channels[0],), jnp.float32, 0.5, 1.5)
    p["conv2_w"] = 0.1 * jax.random.normal(keys[6], (channels[1], channels[0]), jnp.float32)
    p["conv2_b"] = 0.1 * jax.random.normal(keys[7], (channels[1],), jnp.float32)
    p["bn2_gamma"] = 1.0 + 0.1 * jax.random.normal(keys[8], (channels[1],), jnp.float32)
    p["bn2_beta"] = 0.1 * jax.random.normal(keys[9], (channels[1],), jnp.float32)
    p["bn2_mean"] = 0.05 * jax.random.normal(keys[10], (channels[1],), jnp.float32)
    p["bn2_var"] = jax.random.uniform(keys[11], (channels[1],), jnp.float32, 0.5, 1.5)
    kf, kb = jax.random.split(jax.random.fold_in(key, 123))
    flat_dim = channels[1] * spatial * spatial
    p["fc_w"] = 0.02 * jax.random.normal(kf, (output_size, flat_dim), jnp.float32)
    p["fc_b"] = 0.02 * jax.random.normal(kb, (output_size,), jnp.float32)
    return p


# -----------------------------------------------------------------------------
# Pure-JAX reference (mimics PyTorch exactly: NCHW + torch flatten order)
# -----------------------------------------------------------------------------
def feature_flat_reference(params, x_nchw):
    def bn(y, gamma, beta, mean, var):
        return (y - mean[:, None, None]) / jnp.sqrt(var[:, None, None] + _BN_EPS) \
               * gamma[:, None, None] + beta[:, None, None]

    B = x_nchw.shape[0]
    h = jnp.einsum("bchw,oc->bohw", x_nchw, params["conv1_w"]) \
        + params["conv1_b"][None, :, None, None]
    h = jnp.maximum(bn(h, params["bn1_gamma"], params["bn1_beta"],
                       params["bn1_mean"], params["bn1_var"]), 0.0)
    h = jnp.einsum("bchw,oc->bohw", h, params["conv2_w"]) \
        + params["conv2_b"][None, :, None, None]
    h = jnp.maximum(bn(h, params["bn2_gamma"], params["bn2_beta"],
                       params["bn2_mean"], params["bn2_var"]), 0.0)
    h = h.reshape(B, -1)                                     # torch flatten: c*HW + hw
    return h @ params["fc_w"].T + params["fc_b"]


# -----------------------------------------------------------------------------
if __name__ == "__main__":
    B, C, H, W = 2, 4, 16, 16          # input_shape = (4, 16, 16)
    OUTPUT_SIZE = 32

    key = jax.random.PRNGKey(0)
    k_x, k_p = jax.random.split(key)
    x = jax.random.normal(k_x, (B, C, H, W), jnp.float32)
    params = init_feature_flat_params(k_p, C, H, OUTPUT_SIZE)
    ref = np.asarray(feature_flat_reference(params, x))

    fwd = jax.jit(feature_flat_forward)

    # f32 MXU path
    prep_f32 = prepare_params(params, spatial=H, compute_dtype=jnp.float32)
    out_f32 = jax.block_until_ready(fwd(prep_f32, x))
    assert out_f32.shape == (B, OUTPUT_SIZE), out_f32.shape
    assert np.allclose(np.asarray(out_f32), ref, rtol=1e-3, atol=1e-3), \
        "f32 Pallas output does not match reference"

    # bf16 MXU path (recommended default on v5e / v6e / v7x): f32 accumulate
    prep_bf16 = prepare_params(params, spatial=H, compute_dtype=jnp.bfloat16)
    out_bf16 = jax.block_until_ready(fwd(prep_bf16, x))
    assert out_bf16.shape == (B, OUTPUT_SIZE), out_bf16.shape
    assert np.allclose(np.asarray(out_bf16), ref, rtol=2e-2, atol=2e-2), \
        "bf16 Pallas output does not match reference"

    print("KERNEL_OK")
</pallas_src>

<mosaic_0001>
module attributes {stable_mosaic.version = 11 : i64} {
  func.func @_feature_flat_kernel(%arg0: i32, %arg1: memref<1x4x256xf32, #tpu.memory_space<vmem>>, %arg2: memref<256x4xf32, #tpu.memory_space<vmem>>, %arg3: memref<256x1xf32, #tpu.memory_space<vmem>>, %arg4: memref<64x256xf32, #tpu.memory_space<vmem>>, %arg5: memref<64x1xf32, #tpu.memory_space<vmem>>, %arg6: memref<256x2048xf32, #tpu.memory_space<vmem>>, %arg7: memref<1x32xf32, #tpu.memory_space<vmem>>, %arg8: memref<1x1x32xf32, #tpu.memory_space<vmem>>) attributes {dimension_semantics = [#tpu.dimension_semantics<parallel>], iteration_bounds = array<i64: 2>, scalar_prefetch = 0 : i64, scratch_operands = 0 : i64, tpu.core_type = #tpu.core_type<tc>, window_params = [{transform_indices = @transform_0, window_bounds = array<i64: 1, 4, 256>}, {pipeline_mode = #tpu.pipeline_mode<synchronous>, transform_indices = @transform_1, window_bounds = array<i64: 256, 4>}, {pipeline_mode = #tpu.pipeline_mode<synchronous>, transform_indices = @transform_2, window_bounds = array<i64: 256, 1>}, {pipeline_mode = #tpu.pipeline_mode<synchronous>, transform_indices = @transform_3, window_bounds = array<i64: 64, 256>}, {pipeline_mode = #tpu.pipeline_mode<synchronous>, transform_indices = @transform_4, window_bounds = array<i64: 64, 1>}, {pipeline_mode = #tpu.pipeline_mode<synchronous>, transform_indices = @transform_5, window_bounds = array<i64: 256, 2048>}, {pipeline_mode = #tpu.pipeline_mode<synchronous>, transform_indices = @transform_6, window_bounds = array<i64: 1, 32>}, {transform_indices = @transform_7, window_bounds = array<i64: 1, 1, 32>}]} {
    %c0 = arith.constant 0 : index
    %c0_0 = arith.constant 0 : index
    %c0_1 = arith.constant 0 : index
    %0 = vector.load %arg1[%c0, %c0_0, %c0_1] : memref<1x4x256xf32, #tpu.memory_space<vmem>>, vector<1x4x256xf32>
    %1 = vector.shape_cast %0 : vector<1x4x256xf32> to vector<4x256xf32>
    %c0_2 = arith.constant 0 : index
    %c0_3 = arith.constant 0 : index
    %2 = vector.load %arg2[%c0_2, %c0_3] : memref<256x4xf32, #tpu.memory_space<vmem>>, vector<256x4xf32>
    %cst = arith.constant dense<0.000000e+00> : vector<256x256xf32>
    %3 = tpu.matmul %2, %1, %cst {dimension_numbers = #tpu.dot_dimension_numbers<[1], [0], [0], [1], [0, 0, 1, 1], [], []>} : vector<256x4xf32>, vector<4x256xf32>, vector<256x256xf32> -> vector<256x256xf32>
    %c0_4 = arith.constant 0 : index
    %c0_5 = arith.constant 0 : index
    %4 = vector.load %arg3[%c0_4, %c0_5] : memref<256x1xf32, #tpu.memory_space<vmem>>, vector<256x1xf32>
    %5 = vector.broadcast %4 : vector<256x1xf32> to vector<256x256xf32>
    %6 = arith.addf %3, %5 : vector<256x256xf32>
    %cst_6 = arith.constant 0.000000e+00 : f32
    %7 = vector.broadcast %cst_6 : f32 to vector<256x256xf32>
    %8 = arith.maximumf %6, %7 : vector<256x256xf32>
    %c0_7 = arith.constant 0 : index
    %c0_8 = arith.constant 0 : index
    %9 = vector.load %arg4[%c0_7, %c0_8] : memref<64x256xf32, #tpu.memory_space<vmem>>, vector<64x256xf32>
    %cst_9 = arith.constant dense<0.000000e+00> : vector<64x256xf32>
    %10 = tpu.matmul %9, %8, %cst_9 {dimension_numbers = #tpu.dot_dimension_numbers<[1], [0], [0], [1], [0, 0, 1, 1], [], []>} : vector<64x256xf32>, vector<256x256xf32>, vector<64x256xf32> -> vector<64x256xf32>
    %c0_10 = arith.constant 0 : index
    %c0_11 = arith.constant 0 : index
    %11 = vector.load %arg5[%c0_10, %c0_11] : memref<64x1xf32, #tpu.memory_space<vmem>>, vector<64x1xf32>
    %12 = vector.broadcast %11 : vector<64x1xf32> to vector<64x256xf32>
    %13 = arith.addf %10, %12 : vector<64x256xf32>
    %cst_12 = arith.constant 0.000000e+00 : f32
    %14 = vector.broadcast %cst_12 : f32 to vector<64x256xf32>
    %15 = arith.maximumf %13, %14 : vector<64x256xf32>
    %16 = tpu.iota {dimensions = array<i32: 0>} : vector<16x512xi32>
    %17 = tpu.iota {dimensions = array<i32: 1>} : vector<16x512xi32>
    %c32_i32 = arith.constant 32 : i32
    %18 = vector.broadcast %c32_i32 : i32 to vector<16x512xi32>
    %19 = arith.muli %16, %18 : vector<16x512xi32>
    %20 = arith.cmpi sge, %17, %19 : vector<16x512xi32>
    %c1_i32 = arith.constant 1 : i32
    %21 = vector.broadcast %c1_i32 : i32 to vector<16x512xi32>
    %22 = arith.addi %16, %21 : vector<16x512xi32>
    %c32_i32_13 = arith.constant 32 : i32
    %23 = vector.broadcast %c32_i32_13 : i32 to vector<16x512xi32>
    %24 = arith.muli %22, %23 : vector<16x512xi32>
    %25 = arith.cmpi slt, %17, %24 : vector<16x512xi32>
    %26 = arith.andi %20, %25 : vector<16x512xi1>
    %c0_14 = arith.constant 0 : index
    %c0_15 = arith.constant 0 : index
    %27 = vector.load %arg7[%c0_14, %c0_15] : memref<1x32xf32, #tpu.memory_space<vmem>>, vector<1x32xf32>
    %28 = vector.extract_strided_slice %15 {offsets = [0, 0], sizes = [16, 256], strides = [1, 1]} : vector<64x256xf32> to vector<16x256xf32>
    %c0_16 = arith.constant 0 : index
    %c0_17 = arith.constant 0 : index
    %29 = vector.load %arg6[%c0_16, %c0_17] : memref<256x2048xf32, #tpu.memory_space<vmem>>, vector<256x512xf32>
    %cst_18 = arith.constant dense<0.000000e+00> : vector<16x512xf32>
    %30 = tpu.matmul %28, %29, %cst_18 {dimension_numbers = #tpu.dot_dimension_numbers<[1], [0], [0], [1], [0, 0, 1, 1], [], []>} : vector<16x256xf32>, vector<256x512xf32>, vector<16x512xf32> -> vector<16x512xf32>
    %cst_19 = arith.constant 0.000000e+00 : f32
    %31 = vector.broadcast %cst_19 : f32 to vector<16x512xf32>
    %32 = arith.select %26, %30, %31 : vector<16x512xi1>, vector<16x512xf32>
    %cst_20 = arith.constant dense<0.000000e+00> : vector<512xf32>
    %33 = vector.multi_reduction <add>, %32, %cst_20 [0] : vector<16x512xf32> to vector<512xf32>
    %34 = vector.shape_cast %33 : vector<512xf32> to vector<1x512xf32>
    %35 = vector.extract_strided_slice %34 {offsets = [0, 0], sizes = [1, 256], strides = [1, 1]} : vector<1x512xf32> to vector<1x256xf32>
    %36 = vector.extract_strided_slice %34 {offsets = [0, 256], sizes = [1, 256], strides = [1, 1]} : vector<1x512xf32> to vector<1x256xf32>
    %37 = arith.addf %35, %36 : vector<1x256xf32>
    %38 = vector.extract_strided_slice %37 {offsets = [0, 0], sizes = [1, 128], strides = [1, 1]} : vector<1x256xf32> to vector<1x128xf32>
    %39 = vector.extract_strided_slice %37 {offsets = [0, 128], sizes = [1, 128], strides = [1, 1]} : vector<1x256xf32> to vector<1x128xf32>
    %40 = arith.addf %38, %39 : vector<1x128xf32>
    %41 = vector.extract_strided_slice %40 {offsets = [0, 0], sizes = [1, 64], strides = [1, 1]} : vector<1x128xf32> to vector<1x64xf32>
    %42 = vector.extract_strided_slice %40 {offsets = [0, 64], sizes = [1, 64], strides = [1, 1]} : vector<1x128xf32> to vector<1x64xf32>
    %43 = arith.addf %41, %42 : vector<1x64xf32>
    %44 = vector.extract_strided_slice %43 {offsets = [0, 0], sizes = [1, 32], strides = [1, 1]} : vector<1x64xf32> to vector<1x32xf32>
    %45 = vector.extract_strided_slice %43 {offsets = [0, 32], sizes = [1, 32], strides = [1, 1]} : vector<1x64xf32> to vector<1x32xf32>
    %46 = arith.addf %44, %45 : vector<1x32xf32>
    %47 = arith.addf %27, %46 : vector<1x32xf32>
    %48 = vector.extract_strided_slice %15 {offsets = [16, 0], sizes = [16, 256], strides = [1, 1]} : vector<64x256xf32> to vector<16x256xf32>
    %c0_21 = arith.constant 0 : index
    %c512 = arith.constant 512 : index
    %49 = vector.load %arg6[%c0_21, %c512] : memref<256x2048xf32, #tpu.memory_space<vmem>>, vector<256x512xf32>
    %cst_22 = arith.constant dense<0.000000e+00> : vector<16x512xf32>
    %50 = tpu.matmul %48, %49, %cst_22 {dimension_numbers = #tpu.dot_dimension_numbers<[1], [0], [0], [1], [0, 0, 1, 1], [], []>} : vector<16x256xf32>, vector<256x512xf32>, vector<16x512xf32> -> vector<16x512xf32>
    %cst_23 = arith.constant 0.000000e+00 : f32
    %51 = vector.broadcast %cst_23 : f32 to vector<16x512xf32>
    %52 = arith.select %26, %50, %51 : vector<16x512xi1>, vector<16x512xf32>
    %cst_24 = arith.constant dense<0.000000e+00> : vector<512xf32>
    %53 = vector.multi_reduction <add>, %52, %cst_24 [0] : vector<16x512xf32> to vector<512xf32>
    %54 = vector.shape_cast %53 : vector<512xf32> to vector<1x512xf32>
    %55 = vector.extract_strided_slice %54 {offsets = [0, 0], sizes = [1, 256], strides = [1, 1]} : vector<1x512xf32> to vector<1x256xf32>
    %56 = vector.extract_strided_slice %54 {offsets = [0, 256], sizes = [1, 256], strides = [1, 1]} : vector<1x512xf32> to vector<1x256xf32>
    %57 = arith.addf %55, %56 : vector<1x256xf32>
    %58 = vector.extract_strided_slice %57 {offsets = [0, 0], sizes = [1, 128], strides = [1, 1]} : vector<1x256xf32> to vector<1x128xf32>
    %59 = vector.extract_strided_slice %57 {offsets = [0, 128], sizes = [1, 128], strides = [1, 1]} : vector<1x256xf32> to vector<1x128xf32>
    %60 = arith.addf %58, %59 : vector<1x128xf32>
    %61 = vector.extract_strided_slice %60 {offsets = [0, 0], sizes = [1, 64], strides = [1, 1]} : vector<1x128xf32> to vector<1x64xf32>
    %62 = vector.extract_strided_slice %60 {offsets = [0, 64], sizes = [1, 64], strides = [1, 1]} : vector<1x128xf32> to vector<1x64xf32>
    %63 = arith.addf %61, %62 : vector<1x64xf32>
    %64 = vector.extract_strided_slice %63 {offsets = [0, 0], sizes = [1, 32], strides = [1, 1]} : vector<1x64xf32> to vector<1x32xf32>
    %65 = vector.extract_strided_slice %63 {offsets = [0, 32], sizes = [1, 32], strides = [1, 1]} : vector<1x64xf32> to vector<1x32xf32>
    %66 = arith.addf %64, %65 : vector<1x32xf32>
    %67 = arith.addf %47, %66 : vector<1x32xf32>
    %68 = vector.extract_strided_slice %15 {offsets = [32, 0], sizes = [16, 256], strides = [1, 1]} : vector<64x256xf32> to vector<16x256xf32>
    %c0_25 = arith.constant 0 : index
    %c1024 = arith.constant 1024 : index
    %69 = vector.load %arg6[%c0_25, %c1024] : memref<256x2048xf32, #tpu.memory_space<vmem>>, vector<256x512xf32>
    %cst_26 = arith.constant dense<0.000000e+00> : vector<16x512xf32>
    %70 = tpu.matmul %68, %69, %cst_26 {dimension_numbers = #tpu.dot_dimension_numbers<[1], [0], [0], [1], [0, 0, 1, 1], [], []>} : vector<16x256xf32>, vector<256x512xf32>, vector<16x512xf32> -> vector<16x512xf32>
    %cst_27 = arith.constant 0.000000e+00 : f32
    %71 = vector.broadcast %cst_27 : f32 to vector<16x512xf32>
    %72 = arith.select %26, %70, %71 : vector<16x512xi1>, vector<16x512xf32>
    %cst_28 = arith.constant dense<0.000000e+00> : vector<512xf32>
    %73 = vector.multi_reduction <add>, %72, %cst_28 [0] : vector<16x512xf32> to vector<512xf32>
    %74 = vector.shape_cast %73 : vector<512xf32> to vector<1x512xf32>
    %75 = vector.extract_strided_slice %74 {offsets = [0, 0], sizes = [1, 256], strides = [1, 1]} : vector<1x512xf32> to vector<1x256xf32>
    %76 = vector.extract_strided_slice %74 {offsets = [0, 256], sizes = [1, 256], strides = [1, 1]} : vector<1x512xf32> to vector<1x256xf32>
    %77 = arith.addf %75, %76 : vector<1x256xf32>
    %78 = vector.extract_strided_slice %77 {offsets = [0, 0], sizes = [1, 128], strides = [1, 1]} : vector<1x256xf32> to vector<1x128xf32>
    %79 = vector.extract_strided_slice %77 {offsets = [0, 128], sizes = [1, 128], strides = [1, 1]} : vector<1x256xf32> to vector<1x128xf32>
    %80 = arith.addf %78, %79 : vector<1x128xf32>
    %81 = vector.extract_strided_slice %80 {offsets = [0, 0], sizes = [1, 64], strides = [1, 1]} : vector<1x128xf32> to vector<1x64xf32>
    %82 = vector.extract_strided_slice %80 {offsets = [0, 64], sizes = [1, 64], strides = [1, 1]} : vector<1x128xf32> to vector<1x64xf32>
    %83 = arith.addf %81, %82 : vector<1x64xf32>
    %84 = vector.extract_strided_slice %83 {offsets = [0, 0], sizes = [1, 32], strides = [1, 1]} : vector<1x64xf32> to vector<1x32xf32>
    %85 = vector.extract_strided_slice %83 {offsets = [0, 32], sizes = [1, 32], strides = [1, 1]} : vector<1x64xf32> to vector<1x32xf32>
    %86 = arith.addf %84, %85 : vector<1x32xf32>
    %87 = arith.addf %67, %86 : vector<1x32xf32>
    %88 = vector.extract_strided_slice %15 {offsets = [48, 0], sizes = [16, 256], strides = [1, 1]} : vector<64x256xf32> to vector<16x256xf32>
    %c0_29 = arith.constant 0 : index
    %c1536 = arith.constant 1536 : index
    %89 = vector.load %arg6[%c0_29, %c1536] : memref<256x2048xf32, #tpu.memory_space<vmem>>, vector<256x512xf32>
    %cst_30 = arith.constant dense<0.000000e+00> : vector<16x512xf32>
    %90 = tpu.matmul %88, %89, %cst_30 {dimension_numbers = #tpu.dot_dimension_numbers<[1], [0], [0], [1], [0, 0, 1, 1], [], []>} : vector<16x256xf32>, vector<256x512xf32>, vector<16x512xf32> -> vector<16x512xf32>
    %cst_31 = arith.constant 0.000000e+00 : f32
    %91 = vector.broadcast %cst_31 : f32 to vector<16x512xf32>
    %92 = arith.select %26, %90, %91 : vector<16x512xi1>, vector<16x512xf32>
    %cst_32 = arith.constant dense<0.000000e+00> : vector<512xf32>
    %93 = vector.multi_reduction <add>, %92, %cst_32 [0] : vector<16x512xf32> to vector<512xf32>
    %94 = vector.shape_cast %93 : vector<512xf32> to vector<1x512xf32>
    %95 = vector.extract_strided_slice %94 {offsets = [0, 0], sizes = [1, 256], strides = [1, 1]} : vector<1x512xf32> to vector<1x256xf32>
    %96 = vector.extract_strided_slice %94 {offsets = [0, 256], sizes = [1, 256], strides = [1, 1]} : vector<1x512xf32> to vector<1x256xf32>
    %97 = arith.addf %95, %96 : vector<1x256xf32>
    %98 = vector.extract_strided_slice %97 {offsets = [0, 0], sizes = [1, 128], strides = [1, 1]} : vector<1x256xf32> to vector<1x128xf32>
    %99 = vector.extract_strided_slice %97 {offsets = [0, 128], sizes = [1, 128], strides = [1, 1]} : vector<1x256xf32> to vector<1x128xf32>
    %100 = arith.addf %98, %99 : vector<1x128xf32>
    %101 = vector.extract_strided_slice %100 {offsets = [0, 0], sizes = [1, 64], strides = [1, 1]} : vector<1x128xf32> to vector<1x64xf32>
    %102 = vector.extract_strided_slice %100 {offsets = [0, 64], sizes = [1, 64], strides = [1, 1]} : vector<1x128xf32> to vector<1x64xf32>
    %103 = arith.addf %101, %102 : vector<1x64xf32>
    %104 = vector.extract_strided_slice %103 {offsets = [0, 0], sizes = [1, 32], strides = [1, 1]} : vector<1x64xf32> to vector<1x32xf32>
    %105 = vector.extract_strided_slice %103 {offsets = [0, 32], sizes = [1, 32], strides = [1, 1]} : vector<1x64xf32> to vector<1x32xf32>
    %106 = arith.addf %104, %105 : vector<1x32xf32>
    %107 = arith.addf %87, %106 : vector<1x32xf32>
    %c0_33 = arith.constant 0 : index
    %c0_34 = arith.constant 0 : index
    %c0_35 = arith.constant 0 : index
    %108 = vector.load %arg8[%c0_33, %c0_34, %c0_35] : memref<1x1x32xf32, #tpu.memory_space<vmem>>, vector<1x1x32xf32>
    %109 = vector.shape_cast %108 : vector<1x1x32xf32> to vector<1x32xf32>
    %110 = vector.shape_cast %107 : vector<1x32xf32> to vector<1x1x32xf32>
    tpu.vector_store %arg8[%c0_33, %c0_34, %c0_35], %110 {strides = array<i32>} : memref<1x1x32xf32, #tpu.memory_space<vmem>>, vector<1x1x32xf32>,
    return
  }
  func.func @transform_0(%arg0: i32) -> (i32, i32, i32) {
    %c0_i32 = arith.constant 0 : i32
    %c0_i32_0 = arith.constant 0 : i32
    %c0_i32_1 = arith.constant 0 : i32
    return %arg0, %c0_i32, %c0_i32_0 : i32, i32, i32
  }
  func.func @transform_1(%arg0: i32) -> (i32, i32) {
    %c0_i32 = arith.constant 0 : i32
    %c0_i32_0 = arith.constant 0 : i32
    %c0_i32_1 = arith.constant 0 : i32
    return %c0_i32, %c0_i32_0 : i32, i32
  }
  func.func @transform_2(%arg0: i32) -> (i32, i32) {
    %c0_i32 = arith.constant 0 : i32
    %c0_i32_0 = arith.constant 0 : i32
    %c0_i32_1 = arith.constant 0 : i32
    return %c0_i32, %c0_i32_0 : i32, i32
  }
  func.func @transform_3(%arg0: i32) -> (i32, i32) {
    %c0_i32 = arith.constant 0 : i32
    %c0_i32_0 = arith.constant 0 : i32
    %c0_i32_1 = arith.constant 0 : i32
    return %c0_i32, %c0_i32_0 : i32, i32
  }
  func.func @transform_4(%arg0: i32) -> (i32, i32) {
    %c0_i32 = arith.constant 0 : i32
    %c0_i32_0 = arith.constant 0 : i32
    %c0_i32_1 = arith.constant 0 : i32
    return %c0_i32, %c0_i32_0 : i32, i32
  }
  func.func @transform_5(%arg0: i32) -> (i32, i32) {
    %c0_i32 = arith.constant 0 : i32
    %c0_i32_0 = arith.constant 0 : i32
    %c0_i32_1 = arith.constant 0 : i32
    return %c0_i32, %c0_i32_0 : i32, i32
  }
  func.func @transform_6(%arg0: i32) -> (i32, i32) {
    %c0_i32 = arith.constant 0 : i32
    %c0_i32_0 = arith.constant 0 : i32
    %c0_i32_1 = arith.constant 0 : i32
    return %c0_i32, %c0_i32_0 : i32, i32
  }
  func.func @transform_7(%arg0: i32) -> (i32, i32, i32) {
    %c0_i32 = arith.constant 0 : i32
    %c0_i32_0 = arith.constant 0 : i32
    %c0_i32_1 = arith.constant 0 : i32
    return %arg0, %c0_i32, %c0_i32_0 : i32, i32, i32
  }
}

</mosaic_0001>

<llo_original>
// kernel: feature_flat_forward.1
$region0: #{feature_flat_forward.1}
  #allocation0 [shape = 'u32[]', space=smem, size = 0x4, offset = 0x4, fixed_abs, tag = 'smem constant byte address 0x4 - core index']
  #allocation1 [shape = 'u32[144,128]{1,0:T(1,128)}', space=vmem, size = 0x12000, scoped, tag = 'internal scratch']
  %s0 = inlined_call_operand.vmem [shape: f32[2,4,256], index: 0, kind: input, shape index: {}]
  %s1 = inlined_call_operand.vmem [shape: f32[256,4], index: 1, kind: input, shape index: {}]
  %s2 = inlined_call_operand.vmem [shape: f32[256,1], index: 2, kind: input, shape index: {}]
  %s3 = inlined_call_operand.hbm [shape: f32[64,256], index: 3, kind: input, shape index: {}]
  %s4 = inlined_call_operand.vmem [shape: f32[64,1], index: 4, kind: input, shape index: {}]
  %s5 = inlined_call_operand.hbm [shape: f32[256,2048], index: 5, kind: input, shape index: {}]
  %s6 = inlined_call_operand.hbm [shape: f32[1,32], index: 6, kind: input, shape index: {}]
  %s7 = inlined_call_operand.hbm [shape: f32[2,1,32], index: 7, kind: output, shape index: {}]
  %s8 = sld [smem:[#allocation0]]
  $region73: #{feature_flat_forward.1} parent=0
    _
  %s10 = ssub.s32 1, %s8
  %s11 = scalar_select 0, %s10, %s8
  $region1: #{feature_flat_forward.1} parent=0
    #allocation2 [shape = 'u8[65536]{0}', space=vmem, size = 0x10000, scoped, tag = 'input window, operand 3, single buffered']
    #allocation3 [shape = 's32[2]{0}', space=sflag, size = 0x8, scoped, tag = 'scoped memory for feature_flat_forward.1']
    #allocation4 [shape = 's32[2]{0}', space=sflag, size = 0x8, scoped, tag = 'scoped memory for feature_flat_forward.1']
    #allocation5 [shape = 'u8[2097152]{0}', space=vmem, size = 0x200000, scoped, tag = 'input window, operand 5, single buffered']
    #allocation6 [shape = 's32[1]{0}', space=sflag, size = 0x4, scoped, tag = 'scoped memory for feature_flat_forward.1']
    #allocation7 [shape = 'u8[512]{0}', space=vmem, size = 0x400, scoped, tag = 'input window, operand 6, single buffered']
    #allocation8 [shape = 'u8[1024]{0}', space=vmem, size = 0x400, scoped, tag = 'output window, operand 0']
    %12 = vsyncpa [#allocation3], 0
    %13 = vsyncpa [#allocation6], 0
    %14 = vsyncpa [#allocation4], 0
    %s15 = scalar_lea.sflag [#allocation4], 1
    %16 = vsyncpa %s15, 0
    loop: start=0, step=1, limit=4
    $region2: #{feature_flat_forward.1} parent=1 // loop_pre_header
      _
    $region3: #{feature_flat_forward.1} parent=1 // loop_header
      %s18 = sphi 0, %s22
      %p19 = scmp.ge.s32.totalorder %s18, 4
      %s28 = sphi 0, %s30
      %s31 = sphi 0, %s28
      %s32 = sphi 0, %s31
      %s48 = sphi 0, %s32
      %s52 = sphi 0, %s52
      %s54 = sphi 0, %s52
      %s55 = sphi 0, %s54
      %s69 = sphi 0, %s55
      %s73 = sphi 0, %s73
      %s75 = sphi 0, %s73
      %s76 = sphi 0, %s75
      %s90 = sphi 0, %s76
      %s94 = sphi 0, %s94
      %s96 = sphi 0, %s94
      %s97 = sphi 0, %s96
      %s111 = sphi 0, %s97
      %s115 = sphi 0, %s115
      %s117 = sphi 0, %s115
      %s118 = sphi 0, %s117
      %s132 = sphi 0, %s118
      %s136 = sphi 0, %s136
      %s138 = sphi 0, %s136
      %s139 = sphi 0, %s138
      %s153 = sphi 0, %s139
      %s157 = sphi 0, %s157
      %s159 = sphi 0, %s157
      %s160 = sphi 0, %s159
      %s174 = sphi 0, %s160
      %s180 = sphi 0, %s182
      %s183 = sphi 0, %s180
      %s184 = sphi 0, %s183
      %s200 = sphi 0, %s184
    $region4: #{feature_flat_forward.1} parent=1 // loop_header_branch
      %21 = sbr.rel (%p19) target = $region8
    $region5: #{feature_flat_forward.1} parent=1 // loop_body
      %s23 = ssub.s32 %s18, 1
      %s24 = ssub.s32 %s18, 2
      %s25 = sadd.s32 %s18, 1
      %s26 = ssub.s32 %s18, %s25
      %p27 = scmp.eq.s32.totalorder %s26, 0
      %s29 = sadd.s32 %s28, 1
      %s30 = scalar_select %p27, %s28, %s29
      %p33 = pneg %p27
      %p34 = scmp.eq.s32.totalorder %s18, 1
      %p35 = por %p33, %p34
      %p36 = scmp.ne.s32.totalorder %s28, %s31
      %p37 = scmp.eq.s32.totalorder %s18, 0
      %p38 = por %p36, %p37
      %p39 = scmp.ne.s32.totalorder %s28, %s31
      %p40 = scmp.eq.s32.totalorder %s23, 1
      %p41 = por %p39, %p40
      %p42 = scmp.ne.s32.totalorder %s31, %s32
      %p43 = scmp.eq.s32.totalorder %s23, 0
      %p44 = por %p42, %p43
      %p45 = scmp.ne.s32.totalorder %s31, %s32
      %p46 = scmp.eq.s32.totalorder %s24, 1
      %p47 = por %p45, %p46
      %p49 = scmp.ne.s32.totalorder %s32, %s48
      %p50 = scmp.eq.s32.totalorder %s24, 0
      %p51 = por %p49, %p50
      %s53 = sadd.s32 %s52, 1
      %p56 = scmp.eq.s32.totalorder %s18, 1
      %p57 = scmp.ne.s32.totalorder %s52, %s54
      %p58 = scmp.eq.s32.totalorder %s18, 0
      %p59 = por %p57, %p58
      %p60 = scmp.ne.s32.totalorder %s52, %s54
      %p61 = scmp.eq.s32.totalorder %s23, 1
      %p62 = por %p60, %p61
      %p63 = scmp.ne.s32.totalorder %s54, %s55
      %p64 = scmp.eq.s32.totalorder %s23, 0
      %p65 = por %p63, %p64
      %p66 = scmp.ne.s32.totalorder %s54, %s55
      %p67 = scmp.eq.s32.totalorder %s24, 1
      %p68 = por %p66, %p67
      %p70 = scmp.ne.s32.totalorder %s55, %s69
      %p71 = scmp.eq.s32.totalorder %s24, 0
      %p72 = por %p70, %p71
      %s74 = sadd.s32 %s73, 1
      %p77 = scmp.eq.s32.totalorder %s18, 1
      %p78 = scmp.ne.s32.totalorder %s73, %s75
      %p79 = scmp.eq.s32.totalorder %s18, 0
      %p80 = por %p78, %p79
      %p81 = scmp.ne.s32.totalorder %s73, %s75
      %p82 = scmp.eq.s32.totalorder %s23, 1
      %p83 = por %p81, %p82
      %p84 = scmp.ne.s32.totalorder %s75, %s76
      %p85 = scmp.eq.s32.totalorder %s23, 0
      %p86 = por %p84, %p85
      %p87 = scmp.ne.s32.totalorder %s75, %s76
      %p88 = scmp.eq.s32.totalorder %s24, 1
      %p89 = por %p87, %p88
      %p91 = scmp.ne.s32.totalorder %s76, %s90
      %p92 = scmp.eq.s32.totalorder %s24, 0
      %p93 = por %p91, %p92
      %s95 = sadd.s32 %s94, 1
      %p98 = scmp.eq.s32.totalorder %s18, 1
      %p99 = scmp.ne.s32.totalorder %s94, %s96
      %p100 = scmp.eq.s32.totalorder %s18, 0
      %p101 = por %p99, %p100
      %p102 = scmp.ne.s32.totalorder %s94, %s96
      %p103 = scmp.eq.s32.totalorder %s23, 1
      %p104 = por %p102, %p103
      %p105 = scmp.ne.s32.totalorder %s96, %s97
      %p106 = scmp.eq.s32.totalorder %s23, 0
      %p107 = por %p105, %p106
      %p108 = scmp.ne.s32.totalorder %s96, %s97
      %p109 = scmp.eq.s32.totalorder %s24, 1
      %p110 = por %p108, %p109
      %p112 = scmp.ne.s32.totalorder %s97, %s111
      %p113 = scmp.eq.s32.totalorder %s24, 0
      %p114 = por %p112, %p113
      %s116 = sadd.s32 %s115, 1
      %p119 = scmp.eq.s32.totalorder %s18, 1
      %p120 = scmp.ne.s32.totalorder %s115, %s117
      %p121 = scmp.eq.s32.totalorder %s18, 0
      %p122 = por %p120, %p121
      %p123 = scmp.ne.s32.totalorder %s115, %s117
      %p124 = scmp.eq.s32.totalorder %s23, 1
      %p125 = por %p123, %p124
      %p126 = scmp.ne.s32.totalorder %s117, %s118
      %p127 = scmp.eq.s32.totalorder %s23, 0
      %p128 = por %p126, %p127
      %p129 = scmp.ne.s32.totalorder %s117, %s118
      %p130 = scmp.eq.s32.totalorder %s24, 1
      %p131 = por %p129, %p130
      %p133 = scmp.ne.s32.totalorder %s118, %s132
      %p134 = scmp.eq.s32.totalorder %s24, 0
      %p135 = por %p133, %p134
      %s137 = sadd.s32 %s136, 1
      %p140 = scmp.eq.s32.totalorder %s18, 1
      %p141 = scmp.ne.s32.totalorder %s136, %s138
      %p142 = scmp.eq.s32.totalorder %s18, 0
      %p143 = por %p141, %p142
      %p144 = scmp.ne.s32.totalorder %s136, %s138
      %p145 = scmp.eq.s32.totalorder %s23, 1
      %p146 = por %p144, %p145
      %p147 = scmp.ne.s32.totalorder %s138, %s139
      %p148 = scmp.eq.s32.totalorder %s23, 0
      %p149 = por %p147, %p148
      %p150 = scmp.ne.s32.totalorder %s138, %s139
      %p151 = scmp.eq.s32.totalorder %s24, 1
      %p152 = por %p150, %p151
      %p154 = scmp.ne.s32.totalorder %s139, %s153
      %p155 = scmp.eq.s32.totalorder %s24, 0
      %p156 = por %p154, %p155
      %s158 = sadd.s32 %s157, 1
      %p161 = scmp.eq.s32.totalorder %s18, 1
      %p162 = scmp.ne.s32.totalorder %s157, %s159
      %p163 = scmp.eq.s32.totalorder %s18, 0
      %p164 = por %p162, %p163
      %p165 = scmp.ne.s32.totalorder %s157, %s159
      %p166 = scmp.eq.s32.totalorder %s23, 1
      %p167 = por %p165, %p166
      %p168 = scmp.ne.s32.totalorder %s159, %s160
      %p169 = scmp.eq.s32.totalorder %s23, 0
      %p170 = por %p168, %p169
      %p171 = scmp.ne.s32.totalorder %s159, %s160
      %p172 = scmp.eq.s32.totalorder %s24, 1
      %p173 = por %p171, %p172
      %p175 = scmp.ne.s32.totalorder %s160, %s174
      %p176 = scmp.eq.s32.totalorder %s24, 0
      %p177 = por %p175, %p176
      %s178 = ssub.s32 %s18, %s25
      %p179 = scmp.eq.s32.totalorder %s178, 0
      %s181 = sadd.s32 %s180, 1
      %s182 = scalar_select %p179, %s180, %s181
      %p185 = pneg %p179
      %p186 = scmp.eq.s32.totalorder %s18, 1
      %p187 = por %p185, %p186
      %p188 = scmp.ne.s32.totalorder %s180, %s183
      %p189 = scmp.eq.s32.totalorder %s18, 0
      %p190 = por %p188, %p189
      %p191 = scmp.ne.s32.totalorder %s180, %s183
      %p192 = scmp.eq.s32.totalorder %s23, 1
      %p193 = por %p191, %p192
      %p194 = scmp.ne.s32.totalorder %s183, %s184
      %p195 = scmp.eq.s32.totalorder %s23, 0
      %p196 = por %p194, %p195
      %p197 = scmp.ne.s32.totalorder %s183, %s184
      %p198 = scmp.eq.s32.totalorder %s24, 1
      %p199 = por %p197, %p198
      %p201 = scmp.ne.s32.totalorder %s184, %s200
      %p202 = scmp.eq.s32.totalorder %s24, 0
      %p203 = por %p201, %p202
      %p204 = scmp.le.s32.totalorder 1, %s18
      %p205 = scmp.lt.s32.totalorder %s18, 3
      %p206 = pnand %p204, %p205
      %p207 = pneg %p206
      // Predicated region
      $region9: #{feature_flat_forward.1} parent=5 // pred_check
        _
      $region10: #{feature_flat_forward.1} parent=5 // pred_check_branch
        %209 = sbr.rel (%p206) target = $region12
      $region11: #{feature_flat_forward.1} parent=5 // pred_region
        %s210 = ssub.s32 %s18, 1
        // Predicated region
        $region13: #{feature_flat_forward.1} parent=11 // pred_check
          %p211 = pneg %p65
        $region14: #{feature_flat_forward.1} parent=11 // pred_check_branch
          %213 = sbr.rel (%p211) target = $region16
        $region15: #{feature_flat_forward.1} parent=11 // pred_region
          _
        $region16: #{feature_flat_forward.1} parent=11 // pred_fallthru
          _
        // Predicated region
        $region17: #{feature_flat_forward.1} parent=11 // pred_check
          %p214 = pneg %p86
        $region18: #{feature_flat_forward.1} parent=11 // pred_check_branch
          %216 = sbr.rel (%p214) target = $region20
        $region19: #{feature_flat_forward.1} parent=11 // pred_region
          _
        $region20: #{feature_flat_forward.1} parent=11 // pred_fallthru
          _
        // Predicated region
        $region21: #{feature_flat_forward.1} parent=11 // pred_check
          %p217 = pneg %p107
        $region22: #{feature_flat_forward.1} parent=11 // pred_check_branch
          %219 = sbr.rel (%p217) target = $region24
        $region23: #{feature_flat_forward.1} parent=11 // pred_region
          %s221 = ssub.s32 2048, 2048
          %222 = vsyncadd [#allocation3], %s221
          %s223 = sshll.u32 [#allocation2], 4
          %s224 = int_to_ptr.vmem [resolvable:$true] %s223
          %229 = dma.hbm_to_vmem [thread:$0]  %s3, 2048, %s224, [#allocation3], 256, 256, 16
        $region24: #{feature_flat_forward.1} parent=11 // pred_fallthru
          _
        // Predicated region
        $region25: #{feature_flat_forward.1} parent=11 // pred_check
          %p230 = pneg %p128
        $region26: #{feature_flat_forward.1} parent=11 // pred_check_branch
          %232 = sbr.rel (%p230) target = $region28
        $region27: #{feature_flat_forward.1} parent=11 // pred_region
          _
        $region28: #{feature_flat_forward.1} parent=11 // pred_fallthru
          _
        // Predicated region
        $region29: #{feature_flat_forward.1} parent=11 // pred_check
          %p233 = pneg %p149
        $region30: #{feature_flat_forward.1} parent=11 // pred_check_branch
          %235 = sbr.rel (%p233) target = $region32
        $region31: #{feature_flat_forward.1} parent=11 // pred_region
          %s237 = ssub.s32 65536, 65536
          %238 = vsyncadd [#allocation6], %s237
          %s239 = sshll.u32 [#allocation5], 4
          %s240 = int_to_ptr.vmem [resolvable:$true] %s239
          %245 = dma.hbm_to_vmem [thread:$0]  %s5, 65536, %s240, [#allocation6], 2048, 2048, 128
        $region32: #{feature_flat_forward.1} parent=11 // pred_fallthru
          _
        // Predicated region
        $region33: #{feature_flat_forward.1} parent=11 // pred_check
          %p246 = pneg %p170
        $region34: #{feature_flat_forward.1} parent=11 // pred_check_branch
          %248 = sbr.rel (%p246) target = $region36
        $region35: #{feature_flat_forward.1} parent=11 // pred_region
          %s250 = ssub.s32 16, 16
          %251 = vsyncadd [#allocation6], %s250
          %s253 = sshll.u32 [#allocation7], 4
          %s254 = int_to_ptr.vmem [resolvable:$true] %s253
          %256 = dma.hbm_to_vmem [thread:$0]  %s6, 16, %s254, [#allocation6]
        $region36: #{feature_flat_forward.1} parent=11 // pred_fallthru
          _
      $region12: #{feature_flat_forward.1} parent=5 // pred_fallthru
        _
      %p257 = scmp.lt.s32.totalorder %s18, 2
      // Predicated region
      $region37: #{feature_flat_forward.1} parent=5 // pred_check
        %p258 = pneg %p257
      $region38: #{feature_flat_forward.1} parent=5 // pred_check_branch
        %260 = sbr.rel (%p258) target = $region40
      $region39: #{feature_flat_forward.1} parent=5 // pred_region
        // Predicated region
        $region41: #{feature_flat_forward.1} parent=39 // pred_check
          %p261 = pneg %p38
        $region42: #{feature_flat_forward.1} parent=39 // pred_check_branch
          %263 = sbr.rel (%p261) target = $region44
        $region43: #{feature_flat_forward.1} parent=39 // pred_region
          %p264 = scmp.lt.s32.totalorder %s18, 1
          %s265 = scalar_select %p264, %s18, 1
          %s266 = smul.addr %s265, 2
          %s267 = smul.addr %s266, 4
          %s268 = scalar_lea.vmem %s0, %s267
        $region44: #{feature_flat_forward.1} parent=39 // pred_fallthru
          _
      $region40: #{feature_flat_forward.1} parent=5 // pred_fallthru
        _
      %p269 = scmp.le.s32.totalorder 1, %s18
      %p270 = scmp.lt.s32.totalorder %s18, 3
      %p271 = pnand %p269, %p270
      %p272 = pneg %p271
      // Predicated region
      $region45: #{feature_flat_forward.1} parent=5 // pred_check
        _
      $region46: #{feature_flat_forward.1} parent=5 // pred_check_branch
        %274 = sbr.rel (%p271) target = $region48
      $region47: #{feature_flat_forward.1} parent=5 // pred_region
        %s275 = ssub.s32 %s18, 1
        // Predicated region
        $region49: #{feature_flat_forward.1} parent=47 // pred_check
          %p276 = pneg %p107
        $region50: #{feature_flat_forward.1} parent=47 // pred_check_branch
          %278 = sbr.rel (%p276) target = $region52
        $region51: #{feature_flat_forward.1} parent=47 // pred_region
          %279 = dma.done [#allocation3], 2048
        $region52: #{feature_flat_forward.1} parent=47 // pred_fallthru
          _
        // Predicated region
        $region53: #{feature_flat_forward.1} parent=47 // pred_check
          %p280 = pneg %p149
        $region54: #{feature_flat_forward.1} parent=47 // pred_check_branch
          %282 = sbr.rel (%p280) target = $region56
        $region55: #{feature_flat_forward.1} parent=47 // pred_region
          %283 = dma.done [#allocation6], 65536
        $region56: #{feature_flat_forward.1} parent=47 // pred_fallthru
          _
        // Predicated region
        $region57: #{feature_flat_forward.1} parent=47 // pred_check
          %p284 = pneg %p170
        $region58: #{feature_flat_forward.1} parent=47 // pred_check_branch
          %286 = sbr.rel (%p284) target = $region60
        $region59: #{feature_flat_forward.1} parent=47 // pred_region
          %287 = dma.done [#allocation6], 16
        $region60: #{feature_flat_forward.1} parent=47 // pred_fallthru
          _
        %p288 = scmp.lt.s32.totalorder %s23, 1
        %s289 = scalar_select %p288, %s23, 1
        %s290 = smul.addr %s289, 2
        %s291 = smul.addr %s290, 4
        %s292 = scalar_lea.vmem %s0, %s291
        %p293 = pneg %p44
        %p294 = pneg %p41
        %p295 = pneg %p65
        %p296 = pneg %p62
        %p297 = pneg %p86
        %p298 = pneg %p83
        %p299 = pneg %p107
        %p300 = pneg %p104
        %p301 = pneg %p128
        %p302 = pneg %p125
        %p303 = pneg %p149
        %p304 = pneg %p146
        %p305 = pneg %p170
        %p306 = pneg %p167
        %p307 = pneg %p196
        %p308 = pneg %p193
        %s309 = sand.u32 %s183, 1
        %s310 = scalar_lea.sflag [#allocation4], %s309
        %s311 = sand.u32 %s183, 1
        %s312 = scalar_lea.vmem [#allocation8], %s311
        %p313 = scmp.lt.s32.totalorder %s23, 1
        %s314 = scalar_select %p313, %s23, 1
        %s315 = smul.addr %s314, 2
        %s316 = smul.addr %s315, 4
        %s317 = scalar_lea.vmem %s0, %s316
        %v318 = vld [vmem:[%s317] sm:$0xff]
        %v319 = vld [vmem:[%s1] sm:$0xff]
        %v320 = vld [vmem:[%s1 + $0x8] sm:$0xff]
        %v321 = vld [vmem:[%s1 + $0x10] sm:$0xff]
        %v322 = vld [vmem:[%s1 + $0x18] sm:$0xff]
        %v323 = vld [vmem:[%s1 + $0x20] sm:$0xff]
        %v324 = vld [vmem:[%s1 + $0x28] sm:$0xff]
        %v325 = vld [vmem:[%s1 + $0x30] sm:$0xff]
        %v326 = vld [vmem:[%s1 + $0x38] sm:$0xff]
        %v327 = vld [vmem:[%s1 + $0x40] sm:$0xff]
        %v328 = vld [vmem:[%s1 + $0x48] sm:$0xff]
        %v329 = vld [vmem:[%s1 + $0x50] sm:$0xff]
        %v330 = vld [vmem:[%s1 + $0x58] sm:$0xff]
        %v331 = vld [vmem:[%s1 + $0x60] sm:$0xff]
        %v332 = vld [vmem:[%s1 + $0x68] sm:$0xff]
        %v333 = vld [vmem:[%s1 + $0x70] sm:$0xff]
        %v334 = vld [vmem:[%s1 + $0x78] sm:$0xff]
        %v335 = vld [vmem:[%s1 + $0x80] sm:$0xff]
        %v336 = vld [vmem:[%s1 + $0x88] sm:$0xff]
        %v337 = vld [vmem:[%s1 + $0x90] sm:$0xff]
        %v338 = vld [vmem:[%s1 + $0x98] sm:$0xff]
        %v339 = vld [vmem:[%s1 + $0xa0] sm:$0xff]
        %v340 = vld [vmem:[%s1 + $0xa8] sm:$0xff]
        %v341 = vld [vmem:[%s1 + $0xb0] sm:$0xff]
        %v342 = vld [vmem:[%s1 + $0xb8] sm:$0xff]
        %v343 = vld [vmem:[%s1 + $0xc0] sm:$0xff]
        %v344 = vld [vmem:[%s1 + $0xc8] sm:$0xff]
        %v345 = vld [vmem:[%s1 + $0xd0] sm:$0xff]
        %v346 = vld [vmem:[%s1 + $0xd8] sm:$0xff]
        %v347 = vld [vmem:[%s1 + $0xe0] sm:$0xff]
        %v348 = vld [vmem:[%s1 + $0xe8] sm:$0xff]
        %v349 = vld [vmem:[%s1 + $0xf0] sm:$0xff]
        %v350 = vld [vmem:[%s1 + $0xf8] sm:$0xff]
        %v351 = vld [vmem:[%s2] sm:$0xff]
        %v352 = vld [vmem:[%s2 + $0x8] sm:$0xff]
        %v353 = vld [vmem:[%s2 + $0x10] sm:$0xff]
        %v354 = vld [vmem:[%s2 + $0x18] sm:$0xff]
        %v355 = vld [vmem:[%s2 + $0x20] sm:$0xff]
        %v356 = vld [vmem:[%s2 + $0x28] sm:$0xff]
        %v357 = vld [vmem:[%s2 + $0x30] sm:$0xff]
        %v358 = vld [vmem:[%s2 + $0x38] sm:$0xff]
        %v359 = vld [vmem:[%s2 + $0x40] sm:$0xff]
        %v360 = vld [vmem:[%s2 + $0x48] sm:$0xff]
        %v361 = vld [vmem:[%s2 + $0x50] sm:$0xff]
        %v362 = vld [vmem:[%s2 + $0x58] sm:$0xff]
        %v363 = vld [vmem:[%s2 + $0x60] sm:$0xff]
        %v364 = vld [vmem:[%s2 + $0x68] sm:$0xff]
        %v365 = vld [vmem:[%s2 + $0x70] sm:$0xff]
        %v366 = vld [vmem:[%s2 + $0x78] sm:$0xff]
        %v367 = vld [vmem:[%s2 + $0x80] sm:$0xff]
        %v368 = vld [vmem:[%s2 + $0x88] sm:$0xff]
        %v369 = vld [vmem:[%s2 + $0x90] sm:$0xff]
        %v370 = vld [vmem:[%s2 + $0x98] sm:$0xff]
        %v371 = vld [vmem:[%s2 + $0xa0] sm:$0xff]
        %v372 = vld [vmem:[%s2 + $0xa8] sm:$0xff]
        %v373 = vld [vmem:[%s2 + $0xb0] sm:$0xff]
        %v374 = vld [vmem:[%s2 + $0xb8] sm:$0xff]
        %v375 = vld [vmem:[%s2 + $0xc0] sm:$0xff]
        %v376 = vld [vmem:[%s2 + $0xc8] sm:$0xff]
        %v377 = vld [vmem:[%s2 + $0xd0] sm:$0xff]
        %v378 = vld [vmem:[%s2 + $0xd8] sm:$0xff]
        %v379 = vld [vmem:[%s2 + $0xe0] sm:$0xff]
        %v380 = vld [vmem:[%s2 + $0xe8] sm:$0xff]
        %v381 = vld [vmem:[%s2 + $0xf0] sm:$0xff]
        %v382 = vld [vmem:[%s2 + $0xf8] sm:$0xff]
        %384 = vset.pattern.permute.xlu0 0
        %385 = vperm.xlu0 %384, %v351
        %v386 = vpop.permute.xlu0 %385
        %389 = vset.pattern.permute.xlu0 0
        %390 = vperm.xlu0 %389, %v352
        %v391 = vpop.permute.xlu0 %390
        %394 = vset.pattern.permute.xlu0 0
        %395 = vperm.xlu0 %394, %v353
        %v396 = vpop.permute.xlu0 %395
        %399 = vset.pattern.permute.xlu0 0
        %400 = vperm.xlu0 %399, %v354
        %v401 = vpop.permute.xlu0 %400
        %404 = vset.pattern.permute.xlu0 0
        %405 = vperm.xlu0 %404, %v355
        %v406 = vpop.permute.xlu0 %405
        %409 = vset.pattern.permute.xlu0 0
        %410 = vperm.xlu0 %409, %v356
        %v411 = vpop.permute.xlu0 %410
        %414 = vset.pattern.permute.xlu0 0
        %415 = vperm.xlu0 %414, %v357
        %v416 = vpop.permute.xlu0 %415
        %419 = vset.pattern.permute.xlu0 0
        %420 = vperm.xlu0 %419, %v358
        %v421 = vpop.permute.xlu0 %420
        %424 = vset.pattern.permute.xlu0 0
        %425 = vperm.xlu0 %424, %v359
        %v426 = vpop.permute.xlu0 %425
        %429 = vset.pattern.permute.xlu0 0
        %430 = vperm.xlu0 %429, %v360
        %v431 = vpop.permute.xlu0 %430
        %434 = vset.pattern.permute.xlu0 0
        %435 = vperm.xlu0 %434, %v361
        %v436 = vpop.permute.xlu0 %435
        %439 = vset.pattern.permute.xlu0 0
        %440 = vperm.xlu0 %439, %v362
        %v441 = vpop.permute.xlu0 %440
        %444 = vset.pattern.permute.xlu0 0
        %445 = vperm.xlu0 %444, %v363
        %v446 = vpop.permute.xlu0 %445
        %449 = vset.pattern.permute.xlu0 0
        %450 = vperm.xlu0 %449, %v364
        %v451 = vpop.permute.xlu0 %450
        %454 = vset.pattern.permute.xlu0 0
        %455 = vperm.xlu0 %454, %v365
        %v456 = vpop.permute.xlu0 %455
        %459 = vset.pattern.permute.xlu0 0
        %460 = vperm.xlu0 %459, %v366
        %v461 = vpop.permute.xlu0 %460
        %464 = vset.pattern.permute.xlu0 0
        %465 = vperm.xlu0 %464, %v367
        %v466 = vpop.permute.xlu0 %465
        %469 = vset.pattern.permute.xlu0 0
        %470 = vperm.xlu0 %469, %v368
        %v471 = vpop.permute.xlu0 %470
        %474 = vset.pattern.permute.xlu0 0
        %475 = vperm.xlu0 %474, %v369
        %v476 = vpop.permute.xlu0 %475
        %479 = vset.pattern.permute.xlu0 0
        %480 = vperm.xlu0 %479, %v370
        %v481 = vpop.permute.xlu0 %480
        %484 = vset.pattern.permute.xlu0 0
        %485 = vperm.xlu0 %484, %v371
        %v486 = vpop.permute.xlu0 %485
        %489 = vset.pattern.permute.xlu0 0
        %490 = vperm.xlu0 %489, %v372
        %v491 = vpop.permute.xlu0 %490
        %494 = vset.pattern.permute.xlu0 0
        %495 = vperm.xlu0 %494, %v373
        %v496 = vpop.permute.xlu0 %495
        %499 = vset.pattern.permute.xlu0 0
        %500 = vperm.xlu0 %499, %v374
        %v501 = vpop.permute.xlu0 %500
        %504 = vset.pattern.permute.xlu0 0
        %505 = vperm.xlu0 %504, %v375
        %v506 = vpop.permute.xlu0 %505
        %509 = vset.pattern.permute.xlu0 0
        %510 = vperm.xlu0 %509, %v376
        %v511 = vpop.permute.xlu0 %510
        %514 = vset.pattern.permute.xlu0 0
        %515 = vperm.xlu0 %514, %v377
        %v516 = vpop.permute.xlu0 %515
        %519 = vset.pattern.permute.xlu0 0
        %520 = vperm.xlu0 %519, %v378
        %v521 = vpop.permute.xlu0 %520
        %524 = vset.pattern.permute.xlu0 0
        %525 = vperm.xlu0 %524, %v379
        %v526 = vpop.permute.xlu0 %525
        %529 = vset.pattern.permute.xlu0 0
        %530 = vperm.xlu0 %529, %v380
        %v531 = vpop.permute.xlu0 %530
        %534 = vset.pattern.permute.xlu0 0
        %535 = vperm.xlu0 %534, %v381
        %v536 = vpop.permute.xlu0 %535
        %539 = vset.pattern.permute.xlu0 0
        %540 = vperm.xlu0 %539, %v382
        %v541 = vpop.permute.xlu0 %540
        %v544 = vcombine.high %v318, %v318
        %vm545 = vcmask 31744
        %v547 = vsel %vm545, %v319, 0
        %v550 = vsel %vm545, %v320, 0
        %v553 = vsel %vm545, %v321, 0
        %v556 = vsel %vm545, %v322, 0
        %v559 = vsel %vm545, %v323, 0
        %v562 = vsel %vm545, %v324, 0
        %v565 = vsel %vm545, %v325, 0
        %v568 = vsel %vm545, %v326, 0
        %v571 = vsel %vm545, %v327, 0
        %v574 = vsel %vm545, %v328, 0
        %v577 = vsel %vm545, %v329, 0
        %v580 = vsel %vm545, %v330, 0
        %v583 = vsel %vm545, %v331, 0
        %v586 = vsel %vm545, %v332, 0
        %v589 = vsel %vm545, %v333, 0
        %v592 = vsel %vm545, %v334, 0
        %v595 = vsel %vm545, %v335, 0
        %v598 = vsel %vm545, %v336, 0
        %v601 = vsel %vm545, %v337, 0
        %v604 = vsel %vm545, %v338, 0
        %v607 = vsel %vm545, %v339, 0
        %v610 = vsel %vm545, %v340, 0
        %v613 = vsel %vm545, %v341, 0
        %v616 = vsel %vm545, %v342, 0
        %v619 = vsel %vm545, %v343, 0
        %v622 = vsel %vm545, %v344, 0
        %v625 = vsel %vm545, %v345, 0
        %v628 = vsel %vm545, %v346, 0
        %v631 = vsel %vm545, %v347, 0
        %v634 = vsel %vm545, %v348, 0
        %v637 = vsel %vm545, %v349, 0
        %v640 = vsel %vm545, %v350, 0
        %vm642 = vcmask 1043456
        %v643 = vsel %vm642, %v318, 0
        %v645 = vsel %vm642, %v544, 0
        %647 = vmatprep.subr.mxu0 %v645
        %648 = vmatpush1.msra.mxu0 %v643
        %649 = vmatprep.subr.mxu0 0.0
        %650 = vmatpush1.msra.mxu0 0.0
        %651 = vmatprep.subr.mxu0 0.0
        %652 = vmatpush1.msra.mxu0 0.0
        %653 = vmatprep.subr.mxu0 0.0
        %654 = vmatpush1.msra.mxu0 0.0
        %655 = vmatprep.subr.mxu0 0.0
        %656 = vmatpush1.msra.mxu0 0.0
        %657 = vmatprep.subr.mxu0 0.0
        %658 = vmatpush1.msra.mxu0 0.0
        %659 = vmatprep.subr.mxu0 0.0
        %660 = vmatpush1.msra.mxu0 0.0
        %661 = vmatprep.subr.mxu0 0.0
        %662 = vmatpush1.msra.mxu0 0.0
        %663 = vmatprep.subr.mxu0 0.0
        %664 = vmatpush1.msra.mxu0 0.0
        %665 = vmatprep.subr.mxu0 0.0
        %666 = vmatpush1.msra.mxu0 0.0
        %667 = vmatprep.subr.mxu0 0.0
        %668 = vmatpush1.msra.mxu0 0.0
        %669 = vmatprep.subr.mxu0 0.0
        %670 = vmatpush1.msra.mxu0 0.0
        %671 = vmatprep.subr.mxu0 0.0
        %672 = vmatpush1.msra.mxu0 0.0
        %673 = vmatprep.subr.mxu0 0.0
        %674 = vmatpush1.msra.mxu0 0.0
        %675 = vmatprep.subr.mxu0 0.0
        %676 = vmatpush1.msra.mxu0 0.0
        %677 = vmatprep.subr.mxu0 0.0
        %678 = vmatpush1.msra.mxu0 0.0
        %679 = vmatprep.subr.mxu0 0.0
        %680 = vmatpush1.msra.mxu0 0.0
        %681 = vmatprep.subr.mxu0 0.0
        %682 = vmatpush1.msra.mxu0 0.0
        %683 = vmatprep.subr.mxu0 0.0
        %684 = vmatpush1.msra.mxu0 0.0
        %685 = vmatprep.subr.mxu0 0.0
        %686 = vmatpush1.msra.mxu0 0.0
        %687 = vmatprep.subr.mxu0 0.0
        %688 = vmatpush1.msra.mxu0 0.0
        %689 = vmatprep.subr.mxu0 0.0
        %690 = vmatpush1.msra.mxu0 0.0
        %691 = vmatprep.subr.mxu0 0.0
        %692 = vmatpush1.msra.mxu0 0.0
        %693 = vmatprep.subr.mxu0 0.0
        %694 = vmatpush1.msra.mxu0 0.0
        %695 = vmatprep.subr.mxu0 0.0
        %696 = vmatpush1.msra.mxu0 0.0
        %697 = vmatprep.subr.mxu0 0.0
        %698 = vmatpush1.msra.mxu0 0.0
        %699 = vmatprep.subr.mxu0 0.0
        %700 = vmatpush1.msra.mxu0 0.0
        %701 = vmatprep.subr.mxu0 0.0
        %702 = vmatpush1.msra.mxu0 0.0
        %703 = vmatprep.subr.mxu0 0.0
        %704 = vmatpush1.msra.mxu0 0.0
        %705 = vmatprep.subr.mxu0 0.0
        %706 = vmatpush1.msra.mxu0 0.0
        %707 = vmatprep.subr.mxu0 0.0
        %708 = vmatpush1.msra.mxu0 0.0
        %709 = vmatprep.subr.mxu0 0.0
        %710 = vmatpush1.msra.mxu0 0.0
        %711 = vmatprep.mubr.f32.mxu0 0.0
        %712 = vmatmul.mubr.f32.gmra.mrb[0].mxu0 %v547
        %v713 = vpop.f32.mrb[0].mxu0
        %v714 = vadd.f32 %v386, %v713
        %v715 = vpop.f32.mrb[0].mxu0
        %v716 = vadd.f32 %v386, %v715
        %717 = vmatprep.mubr.f32.mxu0 0.0
        %718 = vmatmul.mubr.f32.gmra.mrb[0].mxu0 %v550
        %v719 = vpop.f32.mrb[0].mxu0
        %v720 = vadd.f32 %v391, %v719
        %v721 = vpop.f32.mrb[0].mxu0
        %v722 = vadd.f32 %v391, %v721
        %723 = vmatprep.mubr.f32.mxu0 0.0
        %724 = vmatmul.mubr.f32.gmra.mrb[0].mxu0 %v553
        %v725 = vpop.f32.mrb[0].mxu0
        %v726 = vadd.f32 %v396, %v725
        %v727 = vpop.f32.mrb[0].mxu0
        %v728 = vadd.f32 %v396, %v727
        %729 = vmatprep.mubr.f32.mxu0 0.0
        %730 = vmatmul.mubr.f32.gmra.mrb[0].mxu0 %v556
        %v731 = vpop.f32.mrb[0].mxu0
        %v732 = vadd.f32 %v401, %v731
        %v733 = vpop.f32.mrb[0].mxu0
        %v734 = vadd.f32 %v401, %v733
        %735 = vmatprep.mubr.f32.mxu0 0.0
        %736 = vmatmul.mubr.f32.gmra.mrb[0].mxu0 %v559
        %v737 = vpop.f32.mrb[0].mxu0
        %v738 = vadd.f32 %v406, %v737
        %v739 = vpop.f32.mrb[0].mxu0
        %v740 = vadd.f32 %v406, %v739
        %741 = vmatprep.mubr.f32.mxu0 0.0
        %742 = vmatmul.mubr.f32.gmra.mrb[0].mxu0 %v562
        %v743 = vpop.f32.mrb[0].mxu0
        %v744 = vadd.f32 %v411, %v743
        %v745 = vpop.f32.mrb[0].mxu0
        %v746 = vadd.f32 %v411, %v745
        %747 = vmatprep.mubr.f32.mxu0 0.0
        %748 = vmatmul.mubr.f32.gmra.mrb[0].mxu0 %v565
        %v749 = vpop.f32.mrb[0].mxu0
        %v750 = vadd.f32 %v416, %v749
        %v751 = vpop.f32.mrb[0].mxu0
        %v752 = vadd.f32 %v416, %v751
        %753 = vmatprep.mubr.f32.mxu0 0.0
        %754 = vmatmul.mubr.f32.gmra.mrb[0].mxu0 %v568
        %v755 = vpop.f32.mrb[0].mxu0
        %v756 = vadd.f32 %v421, %v755
        %v757 = vpop.f32.mrb[0].mxu0
        %v758 = vadd.f32 %v421, %v757
        %759 = vmatprep.mubr.f32.mxu0 0.0
        %760 = vmatmul.mubr.f32.gmra.mrb[0].mxu0 %v571
        %v761 = vpop.f32.mrb[0].mxu0
        %v762 = vadd.f32 %v426, %v761
        %v763 = vpop.f32.mrb[0].mxu0
        %v764 = vadd.f32 %v426, %v763
        %765 = vmatprep.mubr.f32.mxu0 0.0
        %766 = vmatmul.mubr.f32.gmra.mrb[0].mxu0 %v574
        %v767 = vpop.f32.mrb[0].mxu0
        %v768 = vadd.f32 %v431, %v767
        %v769 = vpop.f32.mrb[0].mxu0
        %v770 = vadd.f32 %v431, %v769
        %771 = vmatprep.mubr.f32.mxu0 0.0
        %772 = vmatmul.mubr.f32.gmra.mrb[0].mxu0 %v577
        %v773 = vpop.f32.mrb[0].mxu0
        %v774 = vadd.f32 %v436, %v773
        %v775 = vpop.f32.mrb[0].mxu0
        %v776 = vadd.f32 %v436, %v775
        %777 = vmatprep.mubr.f32.mxu0 0.0
        %778 = vmatmul.mubr.f32.gmra.mrb[0].mxu0 %v580
        %v779 = vpop.f32.mrb[0].mxu0
        %v780 = vadd.f32 %v441, %v779
        %v781 = vpop.f32.mrb[0].mxu0
        %v782 = vadd.f32 %v441, %v781
        %783 = vmatprep.mubr.f32.mxu0 0.0
        %784 = vmatmul.mubr.f32.gmra.mrb[0].mxu0 %v583
        %v785 = vpop.f32.mrb[0].mxu0
        %v786 = vadd.f32 %v446, %v785
        %v787 = vpop.f32.mrb[0].mxu0
        %v788 = vadd.f32 %v446, %v787
        %789 = vmatprep.mubr.f32.mxu0 0.0
        %790 = vmatmul.mubr.f32.gmra.mrb[0].mxu0 %v586
        %v791 = vpop.f32.mrb[0].mxu0
        %v792 = vadd.f32 %v451, %v791
        %v793 = vpop.f32.mrb[0].mxu0
        %v794 = vadd.f32 %v451, %v793
        %795 = vmatprep.mubr.f32.mxu0 0.0
        %796 = vmatmul.mubr.f32.gmra.mrb[0].mxu0 %v589
        %v797 = vpop.f32.mrb[0].mxu0
        %v798 = vadd.f32 %v456, %v797
        %v799 = vpop.f32.mrb[0].mxu0
        %v800 = vadd.f32 %v456, %v799
        %801 = vmatprep.mubr.f32.mxu0 0.0
        %802 = vmatmul.mubr.f32.gmra.mrb[0].mxu0 %v592
        %v803 = vpop.f32.mrb[0].mxu0
        %v804 = vadd.f32 %v461, %v803
        %v805 = vpop.f32.mrb[0].mxu0
        %v806 = vadd.f32 %v461, %v805
        %807 = vmatprep.mubr.f32.mxu0 0.0
        %808 = vmatmul.mubr.f32.gmra.mrb[0].mxu0 %v595
        %v809 = vpop.f32.mrb[0].mxu0
        %v810 = vadd.f32 %v466, %v809
        %v811 = vpop.f32.mrb[0].mxu0
        %v812 = vadd.f32 %v466, %v811
        %813 = vmatprep.mubr.f32.mxu0 0.0
        %814 = vmatmul.mubr.f32.gmra.mrb[0].mxu0 %v598
        %v815 = vpop.f32.mrb[0].mxu0
        %v816 = vadd.f32 %v471, %v815
        %v817 = vpop.f32.mrb[0].mxu0
        %v818 = vadd.f32 %v471, %v817
        %819 = vmatprep.mubr.f32.mxu0 0.0
        %820 = vmatmul.mubr.f32.gmra.mrb[0].mxu0 %v601
        %v821 = vpop.f32.mrb[0].mxu0
        %v822 = vadd.f32 %v476, %v821
        %v823 = vpop.f32.mrb[0].mxu0
        %v824 = vadd.f32 %v476, %v823
        %825 = vmatprep.mubr.f32.mxu0 0.0
        %826 = vmatmul.mubr.f32.gmra.mrb[0].mxu0 %v604
        %v827 = vpop.f32.mrb[0].mxu0
        %v828 = vadd.f32 %v481, %v827
        %v829 = vpop.f32.mrb[0].mxu0
        %v830 = vadd.f32 %v481, %v829
        %831 = vmatprep.mubr.f32.mxu0 0.0
        %832 = vmatmul.mubr.f32.gmra.mrb[0].mxu0 %v607
        %v833 = vpop.f32.mrb[0].mxu0
        %v834 = vadd.f32 %v486, %v833
        %v835 = vpop.f32.mrb[0].mxu0
        %v836 = vadd.f32 %v486, %v835
        %837 = vmatprep.mubr.f32.mxu0 0.0
        %838 = vmatmul.mubr.f32.gmra.mrb[0].mxu0 %v610
        %v839 = vpop.f32.mrb[0].mxu0
        %v840 = vadd.f32 %v491, %v839
        %v841 = vpop.f32.mrb[0].mxu0
        %v842 = vadd.f32 %v491, %v841
        %843 = vmatprep.mubr.f32.mxu0 0.0
        %844 = vmatmul.mubr.f32.gmra.mrb[0].mxu0 %v613
        %v845 = vpop.f32.mrb[0].mxu0
        %v846 = vadd.f32 %v496, %v845
        %v847 = vpop.f32.mrb[0].mxu0
        %v848 = vadd.f32 %v496, %v847
        %849 = vmatprep.mubr.f32.mxu0 0.0
        %850 = vmatmul.mubr.f32.gmra.mrb[0].mxu0 %v616
        %v851 = vpop.f32.mrb[0].mxu0
        %v852 = vadd.f32 %v501, %v851
        %v853 = vpop.f32.mrb[0].mxu0
        %v854 = vadd.f32 %v501, %v853
        %855 = vmatprep.mubr.f32.mxu0 0.0
        %856 = vmatmul.mubr.f32.gmra.mrb[0].mxu0 %v619
        %v857 = vpop.f32.mrb[0].mxu0
        %v858 = vadd.f32 %v506, %v857
        %v859 = vpop.f32.mrb[0].mxu0
        %v860 = vadd.f32 %v506, %v859
        %861 = vmatprep.mubr.f32.mxu0 0.0
        %862 = vmatmul.mubr.f32.gmra.mrb[0].mxu0 %v622
        %v863 = vpop.f32.mrb[0].mxu0
        %v864 = vadd.f32 %v511, %v863
        %v865 = vpop.f32.mrb[0].mxu0
        %v866 = vadd.f32 %v511, %v865
        %867 = vmatprep.mubr.f32.mxu0 0.0
        %868 = vmatmul.mubr.f32.gmra.mrb[0].mxu0 %v625
        %v869 = vpop.f32.mrb[0].mxu0
        %v870 = vadd.f32 %v516, %v869
        %v871 = vpop.f32.mrb[0].mxu0
        %v872 = vadd.f32 %v516, %v871
        %873 = vmatprep.mubr.f32.mxu0 0.0
        %874 = vmatmul.mubr.f32.gmra.mrb[0].mxu0 %v628
        %v875 = vpop.f32.mrb[0].mxu0
        %v876 = vadd.f32 %v521, %v875
        %v877 = vpop.f32.mrb[0].mxu0
        %v878 = vadd.f32 %v521, %v877
        %879 = vmatprep.mubr.f32.mxu0 0.0
        %880 = vmatmul.mubr.f32.gmra.mrb[0].mxu0 %v631
        %v881 = vpop.f32.mrb[0].mxu0
        %v882 = vadd.f32 %v526, %v881
        %v883 = vpop.f32.mrb[0].mxu0
        %v884 = vadd.f32 %v526, %v883
        %885 = vmatprep.mubr.f32.mxu0 0.0
        %886 = vmatmul.mubr.f32.gmra.mrb[0].mxu0 %v634
        %v887 = vpop.f32.mrb[0].mxu0
        %v888 = vadd.f32 %v531, %v887
        %v889 = vpop.f32.mrb[0].mxu0
        %v890 = vadd.f32 %v531, %v889
        %891 = vmatprep.mubr.f32.mxu0 0.0
        %892 = vmatmul.mubr.f32.gmra.mrb[0].mxu0 %v637
        %v893 = vpop.f32.mrb[0].mxu0
        %v894 = vadd.f32 %v536, %v893
        %v895 = vpop.f32.mrb[0].mxu0
        %v896 = vadd.f32 %v536, %v895
        %897 = vmatprep.mubr.f32.mxu0 0.0
        %898 = vmatmul.mubr.f32.gmra.mrb[0].mxu0 %v640
        %v899 = vpop.f32.mrb[0].mxu0
        %v900 = vadd.f32 %v541, %v899
        %v901 = vpop.f32.mrb[0].mxu0
        %v902 = vadd.f32 %v541, %v901
        %903 = vdwg.mxu0
        %v904 = vmax.f32 %v714, 0.0
        %v905 = vmax.f32 %v716, 0.0
        %v906 = vmax.f32 %v720, 0.0
        %v907 = vmax.f32 %v722, 0.0
        %v908 = vmax.f32 %v726, 0.0
        %v909 = vmax.f32 %v728, 0.0
        %v910 = vmax.f32 %v732, 0.0
        %v911 = vmax.f32 %v734, 0.0
        %v912 = vmax.f32 %v738, 0.0
        %v913 = vmax.f32 %v740, 0.0
        %v914 = vmax.f32 %v744, 0.0
        %v915 = vmax.f32 %v746, 0.0
        %v916 = vmax.f32 %v750, 0.0
        %v917 = vmax.f32 %v752, 0.0
        %v918 = vmax.f32 %v756, 0.0
        %v919 = vmax.f32 %v758, 0.0
        %v920 = vmax.f32 %v762, 0.0
        %v921 = vmax.f32 %v764, 0.0
        %v922 = vmax.f32 %v768, 0.0
        %v923 = vmax.f32 %v770, 0.0
        %v924 = vmax.f32 %v774, 0.0
        %v925 = vmax.f32 %v776, 0.0
        %v926 = vmax.f32 %v780, 0.0
        %v927 = vmax.f32 %v782, 0.0
        %v928 = vmax.f32 %v786, 0.0
        %v929 = vmax.f32 %v788, 0.0
        %v930 = vmax.f32 %v792, 0.0
        %v931 = vmax.f32 %v794, 0.0
        %v932 = vmax.f32 %v798, 0.0
        %v933 = vmax.f32 %v800, 0.0
        %v934 = vmax.f32 %v804, 0.0
        %v935 = vmax.f32 %v806, 0.0
        %v936 = vmax.f32 %v810, 0.0
        %v937 = vmax.f32 %v812, 0.0
        %v938 = vmax.f32 %v816, 0.0
        %v939 = vmax.f32 %v818, 0.0
        %v940 = vmax.f32 %v822, 0.0
        %v941 = vmax.f32 %v824, 0.0
        %v942 = vmax.f32 %v828, 0.0
        %v943 = vmax.f32 %v830, 0.0
        %v944 = vmax.f32 %v834, 0.0
        %v945 = vmax.f32 %v836, 0.0
        %v946 = vmax.f32 %v840, 0.0
        %v947 = vmax.f32 %v842, 0.0
        %v948 = vmax.f32 %v846, 0.0
        %v949 = vmax.f32 %v848, 0.0
        %v950 = vmax.f32 %v852, 0.0
        %v951 = vmax.f32 %v854, 0.0
        %v952 = vmax.f32 %v858, 0.0
        %v953 = vmax.f32 %v860, 0.0
        %v954 = vmax.f32 %v864, 0.0
        %v955 = vmax.f32 %v866, 0.0
        %v956 = vmax.f32 %v870, 0.0
        %v957 = vmax.f32 %v872, 0.0
        %v958 = vmax.f32 %v876, 0.0
        %v959 = vmax.f32 %v878, 0.0
        %v960 = vmax.f32 %v882, 0.0
        %v961 = vmax.f32 %v884, 0.0
        %v962 = vmax.f32 %v888, 0.0
        %v963 = vmax.f32 %v890, 0.0
        %v964 = vmax.f32 %v894, 0.0
        %v965 = vmax.f32 %v896, 0.0
        %v966 = vmax.f32 %v900, 0.0
        %v967 = vmax.f32 %v902, 0.0
        %v968 = vld [vmem:[#allocation2] sm:$0xff]
        %v969 = vld [vmem:[#allocation2 + $0x8] sm:$0xff]
        %v970 = vld [vmem:[#allocation2 + $0x10] sm:$0xff]
        %v971 = vld [vmem:[#allocation2 + $0x18] sm:$0xff]
        %v972 = vld [vmem:[#allocation2 + $0x20] sm:$0xff]
        %v973 = vld [vmem:[#allocation2 + $0x28] sm:$0xff]
        %v974 = vld [vmem:[#allocation2 + $0x30] sm:$0xff]
        %v975 = vld [vmem:[#allocation2 + $0x38] sm:$0xff]
        %v976 = vld [vmem:[#allocation2 + $0x40] sm:$0xff]
        %v977 = vld [vmem:[#allocation2 + $0x48] sm:$0xff]
        %v978 = vld [vmem:[#allocation2 + $0x50] sm:$0xff]
        %v979 = vld [vmem:[#allocation2 + $0x58] sm:$0xff]
        %v980 = vld [vmem:[#allocation2 + $0x60] sm:$0xff]
        %v981 = vld [vmem:[#allocation2 + $0x68] sm:$0xff]
        %v982 = vld [vmem:[#allocation2 + $0x70] sm:$0xff]
        %v983 = vld [vmem:[#allocation2 + $0x78] sm:$0xff]
        %v984 = vld [vmem:[%s4] sm:$0xff]
        %v985 = vld [vmem:[%s4 + $0x8] sm:$0xff]
        %v986 = vld [vmem:[%s4 + $0x10] sm:$0xff]
        %v987 = vld [vmem:[%s4 + $0x18] sm:$0xff]
        %v988 = vld [vmem:[%s4 + $0x20] sm:$0xff]
        %v989 = vld [vmem:[%s4 + $0x28] sm:$0xff]
        %v990 = vld [vmem:[%s4 + $0x30] sm:$0xff]
        %v991 = vld [vmem:[%s4 + $0x38] sm:$0xff]
        %993 = vset.pattern.permute.xlu0 0
        %994 = vperm.xlu0 %993, %v984
        %v995 = vpop.permute.xlu0 %994
        %998 = vset.pattern.permute.xlu0 0
        %999 = vperm.xlu0 %998, %v985
        %v1000 = vpop.permute.xlu0 %999
        %1003 = vset.pattern.permute.xlu0 0
        %1004 = vperm.xlu0 %1003, %v986
        %v1005 = vpop.permute.xlu0 %1004
        %1008 = vset.pattern.permute.xlu0 0
        %1009 = vperm.xlu0 %1008, %v987
        %v1010 = vpop.permute.xlu0 %1009
        %1013 = vset.pattern.permute.xlu0 0
        %1014 = vperm.xlu0 %1013, %v988
        %v1015 = vpop.permute.xlu0 %1014
        %1018 = vset.pattern.permute.xlu0 0
        %1019 = vperm.xlu0 %1018, %v989
        %v1020 = vpop.permute.xlu0 %1019
        %1023 = vset.pattern.permute.xlu0 0
        %1024 = vperm.xlu0 %1023, %v990
        %v1025 = vpop.permute.xlu0 %1024
        %1028 = vset.pattern.permute.xlu0 0
        %1029 = vperm.xlu0 %1028, %v991
        %v1030 = vpop.permute.xlu0 %1029
        %1032 = vmatprep.subr.mxu0 %v905
        %1033 = vmatpush1.msra.mxu0 %v904
        %1034 = vmatprep.subr.mxu0 %v907
        %1035 = vmatpush1.msra.mxu0 %v906
        %1036 = vmatprep.subr.mxu0 %v909
        %1037 = vmatpush1.msra.mxu0 %v908
        %1038 = vmatprep.subr.mxu0 %v911
        %1039 = vmatpush1.msra.mxu0 %v910
        %1040 = vmatprep.subr.mxu0 %v913
        %1041 = vmatpush1.msra.mxu0 %v912
        %1042 = vmatprep.subr.mxu0 %v915
        %1043 = vmatpush1.msra.mxu0 %v914
        %1044 = vmatprep.subr.mxu0 %v917
        %1045 = vmatpush1.msra.mxu0 %v916
        %1046 = vmatprep.subr.mxu0 %v919
        %1047 = vmatpush1.msra.mxu0 %v918
        %1048 = vmatprep.subr.mxu0 %v921
        %1049 = vmatpush1.msra.mxu0 %v920
        %1050 = vmatprep.subr.mxu0 %v923
        %1051 = vmatpush1.msra.mxu0 %v922
        %1052 = vmatprep.subr.mxu0 %v925
        %1053 = vmatpush1.msra.mxu0 %v924
        %1054 = vmatprep.subr.mxu0 %v927
        %1055 = vmatpush1.msra.mxu0 %v926
        %1056 = vmatprep.subr.mxu0 %v929
        %1057 = vmatpush1.msra.mxu0 %v928
        %1058 = vmatprep.subr.mxu0 %v931
        %1059 = vmatpush1.msra.mxu0 %v930
        %1060 = vmatprep.subr.mxu0 %v933
        %1061 = vmatpush1.msra.mxu0 %v932
        %1062 = vmatprep.subr.mxu0 %v935
        %1063 = vmatpush1.msra.mxu0 %v934
        %1064 = vmatprep.subr.mxu0 %v937
        %1065 = vmatpush1.msra.mxu0 %v936
        %1066 = vmatprep.subr.mxu0 %v939
        %1067 = vmatpush1.msra.mxu0 %v938
        %1068 = vmatprep.subr.mxu0 %v941
        %1069 = vmatpush1.msra.mxu0 %v940
        %1070 = vmatprep.subr.mxu0 %v943
        %1071 = vmatpush1.msra.mxu0 %v942
        %1072 = vmatprep.subr.mxu0 %v945
        %1073 = vmatpush1.msra.mxu0 %v944
        %1074 = vmatprep.subr.mxu0 %v947
        %1075 = vmatpush1.msra.mxu0 %v946
        %1076 = vmatprep.subr.mxu0 %v949
        %1077 = vmatpush1.msra.mxu0 %v948
        %1078 = vmatprep.subr.mxu0 %v951
        %1079 = vmatpush1.msra.mxu0 %v950
        %1080 = vmatprep.subr.mxu0 %v953
        %1081 = vmatpush1.msra.mxu0 %v952
        %1082 = vmatprep.subr.mxu0 %v955
        %1083 = vmatpush1.msra.mxu0 %v954
        %1084 = vmatprep.subr.mxu0 %v957
        %1085 = vmatpush1.msra.mxu0 %v956
        %1086 = vmatprep.subr.mxu0 %v959
        %1087 = vmatpush1.msra.mxu0 %v958
        %1088 = vmatprep.subr.mxu0 %v961
        %1089 = vmatpush1.msra.mxu0 %v960
        %1090 = vmatprep.subr.mxu0 %v963
        %1091 = vmatpush1.msra.mxu0 %v962
        %1092 = vmatprep.subr.mxu0 %v965
        %1093 = vmatpush1.msra.mxu0 %v964
        %1094 = vmatprep.subr.mxu0 %v967
        %1095 = vmatpush1.msra.mxu0 %v966
        %1096 = vmatprep.mubr.f32.mxu0 %v969
        %1097 = vmatmul.mubr.f32.gmra.mrb[0].mxu0 %v968
        %v1098 = vpop.f32.mrb[0].mxu0
        %v1099 = vadd.f32 %v995, %v1098
        %v1100 = vpop.f32.mrb[0].mxu0
        %v1101 = vadd.f32 %v995, %v1100
        %1102 = vmatprep.mubr.f32.mxu0 %v971
        %1103 = vmatmul.mubr.f32.gmra.mrb[0].mxu0 %v970
        %v1104 = vpop.f32.mrb[0].mxu0
        %v1105 = vadd.f32 %v1000, %v1104
        %v1106 = vpop.f32.mrb[0].mxu0
        %v1107 = vadd.f32 %v1000, %v1106
        %1108 = vmatprep.mubr.f32.mxu0 %v973
        %1109 = vmatmul.mubr.f32.gmra.mrb[0].mxu0 %v972
        %v1110 = vpop.f32.mrb[0].mxu0
        %v1111 = vadd.f32 %v1005, %v1110
        %v1112 = vpop.f32.mrb[0].mxu0
        %v1113 = vadd.f32 %v1005, %v1112
        %1114 = vmatprep.mubr.f32.mxu0 %v975
        %1115 = vmatmul.mubr.f32.gmra.mrb[0].mxu0 %v974
        %v1116 = vpop.f32.mrb[0].mxu0
        %v1117 = vadd.f32 %v1010, %v1116
        %v1118 = vpop.f32.mrb[0].mxu0
        %v1119 = vadd.f32 %v1010, %v1118
        %1120 = vmatprep.mubr.f32.mxu0 %v977
        %1121 = vmatmul.mubr.f32.gmra.mrb[0].mxu0 %v976
        %v1122 = vpop.f32.mrb[0].mxu0
        %v1123 = vadd.f32 %v1015, %v1122
        %v1124 = vpop.f32.mrb[0].mxu0
        %v1125 = vadd.f32 %v1015, %v1124
        %1126 = vmatprep.mubr.f32.mxu0 %v979
        %1127 = vmatmul.mubr.f32.gmra.mrb[0].mxu0 %v978
        %v1128 = vpop.f32.mrb[0].mxu0
        %v1129 = vadd.f32 %v1020, %v1128
        %v1130 = vpop.f32.mrb[0].mxu0
        %v1131 = vadd.f32 %v1020, %v1130
        %1132 = vmatprep.mubr.f32.mxu0 %v981
        %1133 = vmatmul.mubr.f32.gmra.mrb[0].mxu0 %v980
        %v1134 = vpop.f32.mrb[0].mxu0
        %v1135 = vadd.f32 %v1025, %v1134
        %v1136 = vpop.f32.mrb[0].mxu0
        %v1137 = vadd.f32 %v1025, %v1136
        %1138 = vmatprep.mubr.f32.mxu0 %v983
        %1139 = vmatmul.mubr.f32.gmra.mrb[0].mxu0 %v982
        %v1140 = vpop.f32.mrb[0].mxu0
        %v1141 = vadd.f32 %v1030, %v1140
        %v1142 = vpop.f32.mrb[0].mxu0
        %v1143 = vadd.f32 %v1030, %v1142
        %1144 = vdwg.mxu0
        %v1145 = vmax.f32 %v1099, 0.0
        %v1146 = vmax.f32 %v1101, 0.0
        %v1147 = vmax.f32 %v1105, 0.0
        %v1148 = vmax.f32 %v1107, 0.0
        %v1149 = vmax.f32 %v1111, 0.0
        %v1150 = vmax.f32 %v1113, 0.0
        %v1151 = vmax.f32 %v1117, 0.0
        %v1152 = vmax.f32 %v1119, 0.0
        %v1153 = vmax.f32 %v1123, 0.0
        %v1154 = vmax.f32 %v1125, 0.0
        %v1155 = vmax.f32 %v1129, 0.0
        %v1156 = vmax.f32 %v1131, 0.0
        %v1157 = vmax.f32 %v1135, 0.0
        %v1158 = vmax.f32 %v1137, 0.0
        %v1159 = vmax.f32 %v1141, 0.0
        %v1160 = vmax.f32 %v1143, 0.0
        %v1161 = vlaneseq
        %v1162 = vshrl.u32 %v1161, 7
        %v1163 = vadd.s32 %v1162, 8
        %v1164 = vlaneseq
        %v1165 = vand.u32 %v1164, 127
        %v1166 = vadd.s32 %v1165, 128
        %v1167 = vadd.s32 %v1165, 256
        %v1168 = vadd.s32 %v1165, 384
        %v1169 = vmul.u32 %v1162, 32
        %v1170 = vmul.u32 %v1163, 32
        %vm1171 = vcmp.ge.s32.totalorder %v1165, %v1169
        %vm1172 = vcmp.ge.s32.totalorder %v1166, %v1169
        %vm1173 = vcmp.ge.s32.totalorder %v1167, %v1169
        %vm1174 = vcmp.ge.s32.totalorder %v1168, %v1169
        %vm1175 = vcmp.ge.s32.totalorder %v1165, %v1170
        %vm1176 = vcmp.ge.s32.totalorder %v1166, %v1170
        %vm1177 = vcmp.ge.s32.totalorder %v1167, %v1170
        %vm1178 = vcmp.ge.s32.totalorder %v1168, %v1170
        %v1179 = vadd.s32 %v1162, 1
        %v1180 = vadd.s32 %v1163, 1
        %v1181 = vmul.u32 %v1179, 32
        %v1182 = vmul.u32 %v1180, 32
        %vm1183 = vcmp.lt.s32.totalorder %v1165, %v1181
        %vm1184 = vcmp.lt.s32.totalorder %v1166, %v1181
        %vm1185 = vcmp.lt.s32.totalorder %v1167, %v1181
        %vm1186 = vcmp.lt.s32.totalorder %v1168, %v1181
        %vm1187 = vcmp.lt.s32.totalorder %v1165, %v1182
        %vm1188 = vcmp.lt.s32.totalorder %v1166, %v1182
        %vm1189 = vcmp.lt.s32.totalorder %v1167, %v1182
        %vm1190 = vcmp.lt.s32.totalorder %v1168, %v1182
        %vm1191 = vmand %vm1171, %vm1183
        %vm1192 = vmand %vm1172, %vm1184
        %vm1193 = vmand %vm1173, %vm1185
        %vm1194 = vmand %vm1174, %vm1186
        %vm1195 = vmand %vm1175, %vm1187
        %vm1196 = vmand %vm1176, %vm1188
        %vm1197 = vmand %vm1177, %vm1189
        %vm1198 = vmand %vm1178, %vm1190
        %v1199 = vld [vmem:[#allocation7] sm:$0x1]
        %v1200 = vld [vmem:[#allocation5] sm:$0xff]
        %v1201 = vld [vmem:[#allocation5 + $0x8] sm:$0xff]
        %v1202 = vld [vmem:[#allocation5 + $0x10] sm:$0xff]
        %v1203 = vld [vmem:[#allocation5 + $0x18] sm:$0xff]
        %v1204 = vld [vmem:[#allocation5 + $0x80] sm:$0xff]
        %v1205 = vld [vmem:[#allocation5 + $0x88] sm:$0xff]
        %v1206 = vld [vmem:[#allocation5 + $0x90] sm:$0xff]
        %v1207 = vld [vmem:[#allocation5 + $0x98] sm:$0xff]
        %v1208 = vld [vmem:[#allocation5 + $0x100] sm:$0xff]
        %v1209 = vld [vmem:[#allocation5 + $0x108] sm:$0xff]
        %v1210 = vld [vmem:[#allocation5 + $0x110] sm:$0xff]
        %v1211 = vld [vmem:[#allocation5 + $0x118] sm:$0xff]
        %v1212 = vld [vmem:[#allocation5 + $0x180] sm:$0xff]
        %v1213 = vld [vmem:[#allocation5 + $0x188] sm:$0xff]
        %v1214 = vld [vmem:[#allocation5 + $0x190] sm:$0xff]
        %v1215 = vld [vmem:[#allocation5 + $0x198] sm:$0xff]
        %v1216 = vld [vmem:[#allocation5 + $0x200] sm:$0xff]
        %v1217 = vld [vmem:[#allocation5 + $0x208] sm:$0xff]
        %v1218 = vld [vmem:[#allocation5 + $0x210] sm:$0xff]
        %v1219 = vld [vmem:[#allocation5 + $0x218] sm:$0xff]
        %v1220 = vld [vmem:[#allocation5 + $0x280] sm:$0xff]
        %v1221 = vld [vmem:[#allocation5 + $0x288] sm:$0xff]
        %v1222 = vld [vmem:[#allocation5 + $0x290] sm:$0xff]
        %v1223 = vld [vmem:[#allocation5 + $0x298] sm:$0xff]
        %v1224 = vld [vmem:[#allocation5 + $0x300] sm:$0xff]
        %v1225 = vld [vmem:[#allocation5 + $0x308] sm:$0xff]
        %v1226 = vld [vmem:[#allocation5 + $0x310] sm:$0xff]
        %v1227 = vld [vmem:[#allocation5 + $0x318] sm:$0xff]
        %v1228 = vld [vmem:[#allocation5 + $0x380] sm:$0xff]
        %v1229 = vld [vmem:[#allocation5 + $0x388] sm:$0xff]
        %v1230 = vld [vmem:[#allocation5 + $0x390] sm:$0xff]
        %v1231 = vld [vmem:[#allocation5 + $0x398] sm:$0xff]
        %v1232 = vld [vmem:[#allocation5 + $0x400] sm:$0xff]
        %v1233 = vld [vmem:[#allocation5 + $0x408] sm:$0xff]
        %v1234 = vld [vmem:[#allocation5 + $0x410] sm:$0xff]
        %v1235 = vld [vmem:[#allocation5 + $0x418] sm:$0xff]
        %v1236 = vld [vmem:[#allocation5 + $0x480] sm:$0xff]
        %v1237 = vld [vmem:[#allocation5 + $0x488] sm:$0xff]
        %v1238 = vld [vmem:[#allocation5 + $0x490] sm:$0xff]
        %v1239 = vld [vmem:[#allocation5 + $0x498] sm:$0xff]
        %v1240 = vld [vmem:[#allocation5 + $0x500] sm:$0xff]
        %v1241 = vld [vmem:[#allocation5 + $0x508] sm:$0xff]
        %v1242 = vld [vmem:[#allocation5 + $0x510] sm:$0xff]
        %v1243 = vld [vmem:[#allocation5 + $0x518] sm:$0xff]
        %v1244 = vld [vmem:[#allocation5 + $0x580] sm:$0xff]
        %v1245 = vld [vmem:[#allocation5 + $0x588] sm:$0xff]
        %v1246 = vld [vmem:[#allocation5 + $0x590] sm:$0xff]
        %v1247 = vld [vmem:[#allocation5 + $0x598] sm:$0xff]
        %v1248 = vld [vmem:[#allocation5 + $0x600] sm:$0xff]
        %v1249 = vld [vmem:[#allocation5 + $0x608] sm:$0xff]
        %v1250 = vld [vmem:[#allocation5 + $0x610] sm:$0xff]
        %v1251 = vld [vmem:[#allocation5 + $0x618] sm:$0xff]
        %v1252 = vld [vmem:[#allocation5 + $0x680] sm:$0xff]
        %v1253 = vld [vmem:[#allocation5 + $0x688] sm:$0xff]
        %v1254 = vld [vmem:[#allocation5 + $0x690] sm:$0xff]
        %v1255 = vld [vmem:[#allocation5 + $0x698] sm:$0xff]
        %v1256 = vld [vmem:[#allocation5 + $0x700] sm:$0xff]
        %v1257 = vld [vmem:[#allocation5 + $0x708] sm:$0xff]
        %v1258 = vld [vmem:[#allocation5 + $0x710] sm:$0xff]
        %v1259 = vld [vmem:[#allocation5 + $0x718] sm:$0xff]
        %v1260 = vld [vmem:[#allocation5 + $0x780] sm:$0xff]
        %v1261 = vld [vmem:[#allocation5 + $0x788] sm:$0xff]
        %v1262 = vld [vmem:[#allocation5 + $0x790] sm:$0xff]
        %v1263 = vld [vmem:[#allocation5 + $0x798] sm:$0xff]
        %v1264 = vld [vmem:[#allocation5 + $0x800] sm:$0xff]
        %v1265 = vld [vmem:[#allocation5 + $0x808] sm:$0xff]
        %v1266 = vld [vmem:[#allocation5 + $0x810] sm:$0xff]
        %v1267 = vld [vmem:[#allocation5 + $0x818] sm:$0xff]
        %v1268 = vld [vmem:[#allocation5 + $0x880] sm:$0xff]
        %v1269 = vld [vmem:[#allocation5 + $0x888] sm:$0xff]
        %v1270 = vld [vmem:[#allocation5 + $0x890] sm:$0xff]
        %v1271 = vld [vmem:[#allocation5 + $0x898] sm:$0xff]
        %v1272 = vld [vmem:[#allocation5 + $0x900] sm:$0xff]
        %v1273 = vld [vmem:[#allocation5 + $0x908] sm:$0xff]
        %v1274 = vld [vmem:[#allocation5 + $0x910] sm:$0xff]
        %v1275 = vld [vmem:[#allocation5 + $0x918] sm:$0xff]
        %v1276 = vld [vmem:[#allocation5 + $0x980] sm:$0xff]
        %v1277 = vld [vmem:[#allocation5 + $0x988] sm:$0xff]
        %v1278 = vld [vmem:[#allocation5 + $0x990] sm:$0xff]
        %v1279 = vld [vmem:[#allocation5 + $0x998] sm:$0xff]
        %v1280 = vld [vmem:[#allocation5 + $0xa00] sm:$0xff]
        %v1281 = vld [vmem:[#allocation5 + $0xa08] sm:$0xff]
        %v1282 = vld [vmem:[#allocation5 + $0xa10] sm:$0xff]
        %v1283 = vld [vmem:[#allocation5 + $0xa18] sm:$0xff]
        %v1284 = vld [vmem:[#allocation5 + $0xa80] sm:$0xff]
        %v1285 = vld [vmem:[#allocation5 + $0xa88] sm:$0xff]
        %v1286 = vld [vmem:[#allocation5 + $0xa90] sm:$0xff]
        %v1287 = vld [vmem:[#allocation5 + $0xa98] sm:$0xff]
        %v1288 = vld [vmem:[#allocation5 + $0xb00] sm:$0xff]
        %v1289 = vld [vmem:[#allocation5 + $0xb08] sm:$0xff]
        %v1290 = vld [vmem:[#allocation5 + $0xb10] sm:$0xff]
        %v1291 = vld [vmem:[#allocation5 + $0xb18] sm:$0xff]
        %v1292 = vld [vmem:[#allocation5 + $0xb80] sm:$0xff]
        %v1293 = vld [vmem:[#allocation5 + $0xb88] sm:$0xff]
        %v1294 = vld [vmem:[#allocation5 + $0xb90] sm:$0xff]
        %v1295 = vld [vmem:[#allocation5 + $0xb98] sm:$0xff]
        %v1296 = vld [vmem:[#allocation5 + $0xc00] sm:$0xff]
        %v1297 = vld [vmem:[#allocation5 + $0xc08] sm:$0xff]
        %v1298 = vld [vmem:[#allocation5 + $0xc10] sm:$0xff]
        %v1299 = vld [vmem:[#allocation5 + $0xc18] sm:$0xff]
        %v1300 = vld [vmem:[#allocation5 + $0xc80] sm:$0xff]
        %v1301 = vld [vmem:[#allocation5 + $0xc88] sm:$0xff]
        %v1302 = vld [vmem:[#allocation5 + $0xc90] sm:$0xff]
        %v1303 = vld [vmem:[#allocation5 + $0xc98] sm:$0xff]
        %v1304 = vld [vmem:[#allocation5 + $0xd00] sm:$0xff]
        %v1305 = vld [vmem:[#allocation5 + $0xd08] sm:$0xff]
        %v1306 = vld [vmem:[#allocation5 + $0xd10] sm:$0xff]
        %v1307 = vld [vmem:[#allocation5 + $0xd18] sm:$0xff]
        %v1308 = vld [vmem:[#allocation5 + $0xd80] sm:$0xff]
        %v1309 = vld [vmem:[#allocation5 + $0xd88] sm:$0xff]
        %v1310 = vld [vmem:[#allocation5 + $0xd90] sm:$0xff]
        %v1311 = vld [vmem:[#allocation5 + $0xd98] sm:$0xff]
        %v1312 = vld [vmem:[#allocation5 + $0xe00] sm:$0xff]
        %v1313 = vld [vmem:[#allocation5 + $0xe08] sm:$0xff]
        %v1314 = vld [vmem:[#allocation5 + $0xe10] sm:$0xff]
        %v1315 = vld [vmem:[#allocation5 + $0xe18] sm:$0xff]
        %v1316 = vld [vmem:[#allocation5 + $0xe80] sm:$0xff]
        %v1317 = vld [vmem:[#allocation5 + $0xe88] sm:$0xff]
        %v1318 = vld [vmem:[#allocation5 + $0xe90] sm:$0xff]
        %v1319 = vld [vmem:[#allocation5 + $0xe98] sm:$0xff]
        %v1320 = vld [vmem:[#allocation5 + $0xf00] sm:$0xff]
        %v1321 = vld [vmem:[#allocation5 + $0xf08] sm:$0xff]
        %v1322 = vld [vmem:[#allocation5 + $0xf10] sm:$0xff]
        %v1323 = vld [vmem:[#allocation5 + $0xf18] sm:$0xff]
        %v1324 = vld [vmem:[#allocation5 + $0xf80] sm:$0xff]
        %v1325 = vld [vmem:[#allocation5 + $0xf88] sm:$0xff]
        %v1326 = vld [vmem:[#allocation5 + $0xf90] sm:$0xff]
        %v1327 = vld [vmem:[#allocation5 + $0xf98] sm:$0xff]
        %1328 = vmatprep.subr.mxu0 %v1201
        %1329 = vmatpush1.msra.mxu0 %v1200
        %1330 = vmatprep.subr.mxu0 %v1205
        %1331 = vmatpush1.msra.mxu0 %v1204
        %1332 = vmatprep.subr.mxu0 %v1209
        %1333 = vmatpush1.msra.mxu0 %v1208
        %1334 = vmatprep.subr.mxu0 %v1213
        %1335 = vmatpush1.msra.mxu0 %v1212
        %1336 = vmatprep.subr.mxu0 %v1217
        %1337 = vmatpush1.msra.mxu0 %v1216
        %1338 = vmatprep.subr.mxu0 %v1221
        %1339 = vmatpush1.msra.mxu0 %v1220
        %1340 = vmatprep.subr.mxu0 %v1225
        %1341 = vmatpush1.msra.mxu0 %v1224
        %1342 = vmatprep.subr.mxu0 %v1229
        %1343 = vmatpush1.msra.mxu0 %v1228
        %1344 = vmatprep.subr.mxu0 %v1233
        %1345 = vmatpush1.msra.mxu0 %v1232
        %1346 = vmatprep.subr.mxu0 %v1237
        %1347 = vmatpush1.msra.mxu0 %v1236
        %1348 = vmatprep.subr.mxu0 %v1241
        %1349 = vmatpush1.msra.mxu0 %v1240
        %1350 = vmatprep.subr.mxu0 %v1245
        %1351 = vmatpush1.msra.mxu0 %v1244
        %1352 = vmatprep.subr.mxu0 %v1249
        %1353 = vmatpush1.msra.mxu0 %v1248
        %1354 = vmatprep.subr.mxu0 %v1253
        %1355 = vmatpush1.msra.mxu0 %v1252
        %1356 = vmatprep.subr.mxu0 %v1257
        %1357 = vmatpush1.msra.mxu0 %v1256
        %1358 = vmatprep.subr.mxu0 %v1261
        %1359 = vmatpush1.msra.mxu0 %v1260
        %1360 = vmatprep.subr.mxu0 %v1265
        %1361 = vmatpush1.msra.mxu0 %v1264
        %1362 = vmatprep.subr.mxu0 %v1269
        %1363 = vmatpush1.msra.mxu0 %v1268
        %1364 = vmatprep.subr.mxu0 %v1273
        %1365 = vmatpush1.msra.mxu0 %v1272
        %1366 = vmatprep.subr.mxu0 %v1277
        %1367 = vmatpush1.msra.mxu0 %v1276
        %1368 = vmatprep.subr.mxu0 %v1281
        %1369 = vmatpush1.msra.mxu0 %v1280
        %1370 = vmatprep.subr.mxu0 %v1285
        %1371 = vmatpush1.msra.mxu0 %v1284
        %1372 = vmatprep.subr.mxu0 %v1289
        %1373 = vmatpush1.msra.mxu0 %v1288
        %1374 = vmatprep.subr.mxu0 %v1293
        %1375 = vmatpush1.msra.mxu0 %v1292
        %1376 = vmatprep.subr.mxu0 %v1297
        %1377 = vmatpush1.msra.mxu0 %v1296
        %1378 = vmatprep.subr.mxu0 %v1301
        %1379 = vmatpush1.msra.mxu0 %v1300
        %1380 = vmatprep.subr.mxu0 %v1305
        %1381 = vmatpush1.msra.mxu0 %v1304
        %1382 = vmatprep.subr.mxu0 %v1309
        %1383 = vmatpush1.msra.mxu0 %v1308
        %1384 = vmatprep.subr.mxu0 %v1313
        %1385 = vmatpush1.msra.mxu0 %v1312
        %1386 = vmatprep.subr.mxu0 %v1317
        %1387 = vmatpush1.msra.mxu0 %v1316
        %1388 = vmatprep.subr.mxu0 %v1321
        %1389 = vmatpush1.msra.mxu0 %v1320
        %1390 = vmatprep.subr.mxu0 %v1325
        %1391 = vmatpush1.msra.mxu0 %v1324
        %1392 = vmatprep.mubr.f32.mxu0 %v1146
        %1393 = vmatmul.mubr.f32.gmra.mrb[0].mxu0 %v1145
        %v1394 = vpop.f32.mrb[0].mxu0
        %v1395 = vadd.f32 0.0, %v1394
        %v1396 = vpop.f32.mrb[0].mxu0
        %v1397 = vadd.f32 0.0, %v1396
        %1398 = vmatprep.mubr.f32.mxu0 %v1148
        %1399 = vmatmul.mubr.f32.gmra.mrb[0].mxu0 %v1147
        %v1400 = vpop.f32.mrb[0].mxu0
        %v1401 = vadd.f32 0.0, %v1400
        %v1402 = vpop.f32.mrb[0].mxu0
        %v1403 = vadd.f32 0.0, %v1402
        %1404 = vdwg.mxu0
        %1405 = vmatprep.subr.mxu0 %v1203
        %1406 = vmatpush1.msra.mxu0 %v1202
        %1407 = vmatprep.subr.mxu0 %v1207
        %1408 = vmatpush1.msra.mxu0 %v1206
        %1409 = vmatprep.subr.mxu0 %v1211
        %1410 = vmatpush1.msra.mxu0 %v1210
        %1411 = vmatprep.subr.mxu0 %v1215
        %1412 = vmatpush1.msra.mxu0 %v1214
        %1413 = vmatprep.subr.mxu0 %v1219
        %1414 = vmatpush1.msra.mxu0 %v1218
        %1415 = vmatprep.subr.mxu0 %v1223
        %1416 = vmatpush1.msra.mxu0 %v1222
        %1417 = vmatprep.subr.mxu0 %v1227
        %1418 = vmatpush1.msra.mxu0 %v1226
        %1419 = vmatprep.subr.mxu0 %v1231
        %1420 = vmatpush1.msra.mxu0 %v1230
        %1421 = vmatprep.subr.mxu0 %v1235
        %1422 = vmatpush1.msra.mxu0 %v1234
        %1423 = vmatprep.subr.mxu0 %v1239
        %1424 = vmatpush1.msra.mxu0 %v1238
        %1425 = vmatprep.subr.mxu0 %v1243
        %1426 = vmatpush1.msra.mxu0 %v1242
        %1427 = vmatprep.subr.mxu0 %v1247
        %1428 = vmatpush1.msra.mxu0 %v1246
        %1429 = vmatprep.subr.mxu0 %v1251
        %1430 = vmatpush1.msra.mxu0 %v1250
        %1431 = vmatprep.subr.mxu0 %v1255
        %1432 = vmatpush1.msra.mxu0 %v1254
        %1433 = vmatprep.subr.mxu0 %v1259
        %1434 = vmatpush1.msra.mxu0 %v1258
        %1435 = vmatprep.subr.mxu0 %v1263
        %1436 = vmatpush1.msra.mxu0 %v1262
        %1437 = vmatprep.subr.mxu0 %v1267
        %1438 = vmatpush1.msra.mxu0 %v1266
        %1439 = vmatprep.subr.mxu0 %v1271
        %1440 = vmatpush1.msra.mxu0 %v1270
        %1441 = vmatprep.subr.mxu0 %v1275
        %1442 = vmatpush1.msra.mxu0 %v1274
        %1443 = vmatprep.subr.mxu0 %v1279
        %1444 = vmatpush1.msra.mxu0 %v1278
        %1445 = vmatprep.subr.mxu0 %v1283
        %1446 = vmatpush1.msra.mxu0 %v1282
        %1447 = vmatprep.subr.mxu0 %v1287
        %1448 = vmatpush1.msra.mxu0 %v1286
        %1449 = vmatprep.subr.mxu0 %v1291
        %1450 = vmatpush1.msra.mxu0 %v1290
        %1451 = vmatprep.subr.mxu0 %v1295
        %1452 = vmatpush1.msra.mxu0 %v1294
        %1453 = vmatprep.subr.mxu0 %v1299
        %1454 = vmatpush1.msra.mxu0 %v1298
        %1455 = vmatprep.subr.mxu0 %v1303
        %1456 = vmatpush1.msra.mxu0 %v1302
        %1457 = vmatprep.subr.mxu0 %v1307
        %1458 = vmatpush1.msra.mxu0 %v1306
        %1459 = vmatprep.subr.mxu0 %v1311
        %1460 = vmatpush1.msra.mxu0 %v1310
        %1461 = vmatprep.subr.mxu0 %v1315
        %1462 = vmatpush1.msra.mxu0 %v1314
        %1463 = vmatprep.subr.mxu0 %v1319
        %1464 = vmatpush1.msra.mxu0 %v1318
        %1465 = vmatprep.subr.mxu0 %v1323
        %1466 = vmatpush1.msra.mxu0 %v1322
        %1467 = vmatprep.subr.mxu0 %v1327
        %1468 = vmatpush1.msra.mxu0 %v1326
        %1469 = vmatprep.mubr.f32.mxu0 %v1146
        %1470 = vmatmul.mubr.f32.gmra.mrb[0].mxu0 %v1145
        %v1471 = vpop.f32.mrb[0].mxu0
        %v1472 = vadd.f32 0.0, %v1471
        %v1473 = vpop.f32.mrb[0].mxu0
        %v1474 = vadd.f32 0.0, %v1473
        %1475 = vmatprep.mubr.f32.mxu0 %v1148
        %1476 = vmatmul.mubr.f32.gmra.mrb[0].mxu0 %v1147
        %v1477 = vpop.f32.mrb[0].mxu0
        %v1478 = vadd.f32 0.0, %v1477
        %v1479 = vpop.f32.mrb[0].mxu0
        %v1480 = vadd.f32 0.0, %v1479
        %1481 = vdwg.mxu0
        %v1482 = vsel %vm1191, %v1395, 0.0
        %v1483 = vsel %vm1192, %v1397, 0.0
        %v1484 = vsel %vm1193, %v1472, 0.0
        %v1485 = vsel %vm1194, %v1474, 0.0
        %v1486 = vsel %vm1195, %v1401, 0.0
        %v1487 = vsel %vm1196, %v1403, 0.0
        %v1488 = vsel %vm1197, %v1478, 0.0
        %v1489 = vsel %vm1198, %v1480, 0.0
        %v1490 = vadd.f32 %v1482, %v1486
        %v1491 = vrot.slane %v1490, 4
        %v1492 = vadd.f32 %v1490, %v1491
        %v1493 = vrot.slane %v1492, 2
        %v1494 = vadd.f32 %v1492, %v1493
        %v1495 = vrot.slane %v1494, 1
        %v1496 = vadd.f32 %v1494, %v1495
        %v1497 = vadd.f32 %v1483, %v1487
        %v1498 = vrot.slane %v1497, 4
        %v1499 = vadd.f32 %v1497, %v1498
        %v1500 = vrot.slane %v1499, 2
        %v1501 = vadd.f32 %v1499, %v1500
        %v1502 = vrot.slane %v1501, 1
        %v1503 = vadd.f32 %v1501, %v1502
        %v1504 = vadd.f32 %v1484, %v1488
        %v1505 = vrot.slane %v1504, 4
        %v1506 = vadd.f32 %v1504, %v1505
        %v1507 = vrot.slane %v1506, 2
        %v1508 = vadd.f32 %v1506, %v1507
        %v1509 = vrot.slane %v1508, 1
        %v1510 = vadd.f32 %v1508, %v1509
        %v1511 = vadd.f32 %v1485, %v1489
        %v1512 = vrot.slane %v1511, 4
        %v1513 = vadd.f32 %v1511, %v1512
        %v1514 = vrot.slane %v1513, 2
        %v1515 = vadd.f32 %v1513, %v1514
        %v1516 = vrot.slane %v1515, 1
        %v1517 = vadd.f32 %v1515, %v1516
        %v1518 = vadd.f32 %v1496, %v1510
        %v1519 = vadd.f32 %v1503, %v1517
        %v1520 = vadd.f32 %v1518, %v1519
        %1522 = vrot.lane.b32.xlu0 %v1520, 64
        %v1523 = vpop.permute.xlu0 %1522
        %v1525 = vadd.f32 %v1520, %v1523
        %1527 = vrot.lane.b32.xlu0 %v1525, 96
        %v1528 = vpop.permute.xlu0 %1527
        %v1530 = vadd.f32 %v1525, %v1528
        %v1531 = vadd.f32 %v1199, %v1530
        %v1532 = vld [vmem:[#allocation5 + $0x20] sm:$0xff]
        %v1533 = vld [vmem:[#allocation5 + $0x28] sm:$0xff]
        %v1534 = vld [vmem:[#allocation5 + $0x30] sm:$0xff]
        %v1535 = vld [vmem:[#allocation5 + $0x38] sm:$0xff]
        %v1536 = vld [vmem:[#allocation5 + $0xa0] sm:$0xff]
        %v1537 = vld [vmem:[#allocation5 + $0xa8] sm:$0xff]
        %v1538 = vld [vmem:[#allocation5 + $0xb0] sm:$0xff]
        %v1539 = vld [vmem:[#allocation5 + $0xb8] sm:$0xff]
        %v1540 = vld [vmem:[#allocation5 + $0x120] sm:$0xff]
        %v1541 = vld [vmem:[#allocation5 + $0x128] sm:$0xff]
        %v1542 = vld [vmem:[#allocation5 + $0x130] sm:$0xff]
        %v1543 = vld [vmem:[#allocation5 + $0x138] sm:$0xff]
        %v1544 = vld [vmem:[#allocation5 + $0x1a0] sm:$0xff]
        %v1545 = vld [vmem:[#allocation5 + $0x1a8] sm:$0xff]
        %v1546 = vld [vmem:[#allocation5 + $0x1b0] sm:$0xff]
        %v1547 = vld [vmem:[#allocation5 + $0x1b8] sm:$0xff]
        %v1548 = vld [vmem:[#allocation5 + $0x220] sm:$0xff]
        %v1549 = vld [vmem:[#allocation5 + $0x228] sm:$0xff]
        %v1550 = vld [vmem:[#allocation5 + $0x230] sm:$0xff]
        %v1551 = vld [vmem:[#allocation5 + $0x238] sm:$0xff]
        %v1552 = vld [vmem:[#allocation5 + $0x2a0] sm:$0xff]
        %v1553 = vld [vmem:[#allocation5 + $0x2a8] sm:$0xff]
        %v1554 = vld [vmem:[#allocation5 + $0x2b0] sm:$0xff]
        %v1555 = vld [vmem:[#allocation5 + $0x2b8] sm:$0xff]
        %v1556 = vld [vmem:[#allocation5 + $0x320] sm:$0xff]
        %v1557 = vld [vmem:[#allocation5 + $0x328] sm:$0xff]
        %v1558 = vld [vmem:[#allocation5 + $0x330] sm:$0xff]
        %v1559 = vld [vmem:[#allocation5 + $0x338] sm:$0xff]
        %v1560 = vld [vmem:[#allocation5 + $0x3a0] sm:$0xff]
        %v1561 = vld [vmem:[#allocation5 + $0x3a8] sm:$0xff]
        %v1562 = vld [vmem:[#allocation5 + $0x3b0] sm:$0xff]
        %v1563 = vld [vmem:[#allocation5 + $0x3b8] sm:$0xff]
        %v1564 = vld [vmem:[#allocation5 + $0x420] sm:$0xff]
        %v1565 = vld [vmem:[#allocation5 + $0x428] sm:$0xff]
        %v1566 = vld [vmem:[#allocation5 + $0x430] sm:$0xff]
        %v1567 = vld [vmem:[#allocation5 + $0x438] sm:$0xff]
        %v1568 = vld [vmem:[#allocation5 + $0x4a0] sm:$0xff]
        %v1569 = vld [vmem:[#allocation5 + $0x4a8] sm:$0xff]
        %v1570 = vld [vmem:[#allocation5 + $0x4b0] sm:$0xff]
        %v1571 = vld [vmem:[#allocation5 + $0x4b8] sm:$0xff]
        %v1572 = vld [vmem:[#allocation5 + $0x520] sm:$0xff]
        %v1573 = vld [vmem:[#allocation5 + $0x528] sm:$0xff]
        %v1574 = vld [vmem:[#allocation5 + $0x530] sm:$0xff]
        %v1575 = vld [vmem:[#allocation5 + $0x538] sm:$0xff]
        %v1576 = vld [vmem:[#allocation5 + $0x5a0] sm:$0xff]
        %v1577 = vld [vmem:[#allocation5 + $0x5a8] sm:$0xff]
        %v1578 = vld [vmem:[#allocation5 + $0x5b0] sm:$0xff]
        %v1579 = vld [vmem:[#allocation5 + $0x5b8] sm:$0xff]
        %v1580 = vld [vmem:[#allocation5 + $0x620] sm:$0xff]
        %v1581 = vld [vmem:[#allocation5 + $0x628] sm:$0xff]
        %v1582 = vld [vmem:[#allocation5 + $0x630] sm:$0xff]
        %v1583 = vld [vmem:[#allocation5 + $0x638] sm:$0xff]
        %v1584 = vld [vmem:[#allocation5 + $0x6a0] sm:$0xff]
        %v1585 = vld [vmem:[#allocation5 + $0x6a8] sm:$0xff]
        %v1586 = vld [vmem:[#allocation5 + $0x6b0] sm:$0xff]
        %v1587 = vld [vmem:[#allocation5 + $0x6b8] sm:$0xff]
        %v1588 = vld [vmem:[#allocation5 + $0x720] sm:$0xff]
        %v1589 = vld [vmem:[#allocation5 + $0x728] sm:$0xff]
        %v1590 = vld [vmem:[#allocation5 + $0x730] sm:$0xff]
        %v1591 = vld [vmem:[#allocation5 + $0x738] sm:$0xff]
        %v1592 = vld [vmem:[#allocation5 + $0x7a0] sm:$0xff]
        %v1593 = vld [vmem:[#allocation5 + $0x7a8] sm:$0xff]
        %v1594 = vld [vmem:[#allocation5 + $0x7b0] sm:$0xff]
        %v1595 = vld [vmem:[#allocation5 + $0x7b8] sm:$0xff]
        %v1596 = vld [vmem:[#allocation5 + $0x820] sm:$0xff]
        %v1597 = vld [vmem:[#allocation5 + $0x828] sm:$0xff]
        %v1598 = vld [vmem:[#allocation5 + $0x830] sm:$0xff]
        %v1599 = vld [vmem:[#allocation5 + $0x838] sm:$0xff]
        %v1600 = vld [vmem:[#allocation5 + $0x8a0] sm:$0xff]
        %v1601 = vld [vmem:[#allocation5 + $0x8a8] sm:$0xff]
        %v1602 = vld [vmem:[#allocation5 + $0x8b0] sm:$0xff]
        %v1603 = vld [vmem:[#allocation5 + $0x8b8] sm:$0xff]
        %v1604 = vld [vmem:[#allocation5 + $0x920] sm:$0xff]
        %v1605 = vld [vmem:[#allocation5 + $0x928] sm:$0xff]
        %v1606 = vld [vmem:[#allocation5 + $0x930] sm:$0xff]
        %v1607 = vld [vmem:[#allocation5 + $0x938] sm:$0xff]
        %v1608 = vld [vmem:[#allocation5 + $0x9a0] sm:$0xff]
        %v1609 = vld [vmem:[#allocation5 + $0x9a8] sm:$0xff]
        %v1610 = vld [vmem:[#allocation5 + $0x9b0] sm:$0xff]
        %v1611 = vld [vmem:[#allocation5 + $0x9b8] sm:$0xff]
        %v1612 = vld [vmem:[#allocation5 + $0xa20] sm:$0xff]
        %v1613 = vld [vmem:[#allocation5 + $0xa28] sm:$0xff]
        %v1614 = vld [vmem:[#allocation5 + $0xa30] sm:$0xff]
        %v1615 = vld [vmem:[#allocation5 + $0xa38] sm:$0xff]
        %v1616 = vld [vmem:[#allocation5 + $0xaa0] sm:$0xff]
        %v1617 = vld [vmem:[#allocation5 + $0xaa8] sm:$0xff]
        %v1618 = vld [vmem:[#allocation5 + $0xab0] sm:$0xff]
        %v1619 = vld [vmem:[#allocation5 + $0xab8] sm:$0xff]
        %v1620 = vld [vmem:[#allocation5 + $0xb20] sm:$0xff]
        %v1621 = vld [vmem:[#allocation5 + $0xb28] sm:$0xff]
        %v1622 = vld [vmem:[#allocation5 + $0xb30] sm:$0xff]
        %v1623 = vld [vmem:[#allocation5 + $0xb38] sm:$0xff]
        %v1624 = vld [vmem:[#allocation5 + $0xba0] sm:$0xff]
        %v1625 = vld [vmem:[#allocation5 + $0xba8] sm:$0xff]
        %v1626 = vld [vmem:[#allocation5 + $0xbb0] sm:$0xff]
        %v1627 = vld [vmem:[#allocation5 + $0xbb8] sm:$0xff]
        %v1628 = vld [vmem:[#allocation5 + $0xc20] sm:$0xff]
        %v1629 = vld [vmem:[#allocation5 + $0xc28] sm:$0xff]
        %v1630 = vld [vmem:[#allocation5 + $0xc30] sm:$0xff]
        %v1631 = vld [vmem:[#allocation5 + $0xc38] sm:$0xff]
        %v1632 = vld [vmem:[#allocation5 + $0xca0] sm:$0xff]
        %v1633 = vld [vmem:[#allocation5 + $0xca8] sm:$0xff]
        %v1634 = vld [vmem:[#allocation5 + $0xcb0] sm:$0xff]
        %v1635 = vld [vmem:[#allocation5 + $0xcb8] sm:$0xff]
        %v1636 = vld [vmem:[#allocation5 + $0xd20] sm:$0xff]
        %v1637 = vld [vmem:[#allocation5 + $0xd28] sm:$0xff]
        %v1638 = vld [vmem:[#allocation5 + $0xd30] sm:$0xff]
        %v1639 = vld [vmem:[#allocation5 + $0xd38] sm:$0xff]
        %v1640 = vld [vmem:[#allocation5 + $0xda0] sm:$0xff]
        %v1641 = vld [vmem:[#allocation5 + $0xda8] sm:$0xff]
        %v1642 = vld [vmem:[#allocation5 + $0xdb0] sm:$0xff]
        %v1643 = vld [vmem:[#allocation5 + $0xdb8] sm:$0xff]
        %v1644 = vld [vmem:[#allocation5 + $0xe20] sm:$0xff]
        %v1645 = vld [vmem:[#allocation5 + $0xe28] sm:$0xff]
        %v1646 = vld [vmem:[#allocation5 + $0xe30] sm:$0xff]
        %v1647 = vld [vmem:[#allocation5 + $0xe38] sm:$0xff]
        %v1648 = vld [vmem:[#allocation5 + $0xea0] sm:$0xff]
        %v1649 = vld [vmem:[#allocation5 + $0xea8] sm:$0xff]
        %v1650 = vld [vmem:[#allocation5 + $0xeb0] sm:$0xff]
        %v1651 = vld [vmem:[#allocation5 + $0xeb8] sm:$0xff]
        %v1652 = vld [vmem:[#allocation5 + $0xf20] sm:$0xff]
        %v1653 = vld [vmem:[#allocation5 + $0xf28] sm:$0xff]
        %v1654 = vld [vmem:[#allocation5 + $0xf30] sm:$0xff]
        %v1655 = vld [vmem:[#allocation5 + $0xf38] sm:$0xff]
        %v1656 = vld [vmem:[#allocation5 + $0xfa0] sm:$0xff]
        %v1657 = vld [vmem:[#allocation5 + $0xfa8] sm:$0xff]
        %v1658 = vld [vmem:[#allocation5 + $0xfb0] sm:$0xff]
        %v1659 = vld [vmem:[#allocation5 + $0xfb8] sm:$0xff]
        %1660 = vmatprep.subr.mxu0 %v1533
        %1661 = vmatpush1.msra.mxu0 %v1532
        %1662 = vmatprep.subr.mxu0 %v1537
        %1663 = vmatpush1.msra.mxu0 %v1536
        %1664 = vmatprep.subr.mxu0 %v1541
        %1665 = vmatpush1.msra.mxu0 %v1540
        %1666 = vmatprep.subr.mxu0 %v1545
        %1667 = vmatpush1.msra.mxu0 %v1544
        %1668 = vmatprep.subr.mxu0 %v1549
        %1669 = vmatpush1.msra.mxu0 %v1548
        %1670 = vmatprep.subr.mxu0 %v1553
        %1671 = vmatpush1.msra.mxu0 %v1552
        %1672 = vmatprep.subr.mxu0 %v1557
        %1673 = vmatpush1.msra.mxu0 %v1556
        %1674 = vmatprep.subr.mxu0 %v1561
        %1675 = vmatpush1.msra.mxu0 %v1560
        %1676 = vmatprep.subr.mxu0 %v1565
        %1677 = vmatpush1.msra.mxu0 %v1564
        %1678 = vmatprep.subr.mxu0 %v1569
        %1679 = vmatpush1.msra.mxu0 %v1568
        %1680 = vmatprep.subr.mxu0 %v1573
        %1681 = vmatpush1.msra.mxu0 %v1572
        %1682 = vmatprep.subr.mxu0 %v1577
        %1683 = vmatpush1.msra.mxu0 %v1576
        %1684 = vmatprep.subr.mxu0 %v1581
        %1685 = vmatpush1.msra.mxu0 %v1580
        %1686 = vmatprep.subr.mxu0 %v1585
        %1687 = vmatpush1.msra.mxu0 %v1584
        %1688 = vmatprep.subr.mxu0 %v1589
        %1689 = vmatpush1.msra.mxu0 %v1588
        %1690 = vmatprep.subr.mxu0 %v1593
        %1691 = vmatpush1.msra.mxu0 %v1592
        %1692 = vmatprep.subr.mxu0 %v1597
        %1693 = vmatpush1.msra.mxu0 %v1596
        %1694 = vmatprep.subr.mxu0 %v1601
        %1695 = vmatpush1.msra.mxu0 %v1600
        %1696 = vmatprep.subr.mxu0 %v1605
        %1697 = vmatpush1.msra.mxu0 %v1604
        %1698 = vmatprep.subr.mxu0 %v1609
        %1699 = vmatpush1.msra.mxu0 %v1608
        %1700 = vmatprep.subr.mxu0 %v1613
        %1701 = vmatpush1.msra.mxu0 %v1612
        %1702 = vmatprep.subr.mxu0 %v1617
        %1703 = vmatpush1.msra.mxu0 %v1616
        %1704 = vmatprep.subr.mxu0 %v1621
        %1705 = vmatpush1.msra.mxu0 %v1620
        %1706 = vmatprep.subr.mxu0 %v1625
        %1707 = vmatpush1.msra.mxu0 %v1624
        %1708 = vmatprep.subr.mxu0 %v1629
        %1709 = vmatpush1.msra.mxu0 %v1628
        %1710 = vmatprep.subr.mxu0 %v1633
        %1711 = vmatpush1.msra.mxu0 %v1632
        %1712 = vmatprep.subr.mxu0 %v1637
        %1713 = vmatpush1.msra.mxu0 %v1636
        %1714 = vmatprep.subr.mxu0 %v1641
        %1715 = vmatpush1.msra.mxu0 %v1640
        %1716 = vmatprep.subr.mxu0 %v1645
        %1717 = vmatpush1.msra.mxu0 %v1644
        %1718 = vmatprep.subr.mxu0 %v1649
        %1719 = vmatpush1.msra.mxu0 %v1648
        %1720 = vmatprep.subr.mxu0 %v1653
        %1721 = vmatpush1.msra.mxu0 %v1652
        %1722 = vmatprep.subr.mxu0 %v1657
        %1723 = vmatpush1.msra.mxu0 %v1656
        %1724 = vmatprep.mubr.f32.mxu0 %v1150
        %1725 = vmatmul.mubr.f32.gmra.mrb[0].mxu0 %v1149
        %v1726 = vpop.f32.mrb[0].mxu0
        %v1727 = vadd.f32 0.0, %v1726
        %v1728 = vpop.f32.mrb[0].mxu0
        %v1729 = vadd.f32 0.0, %v1728
        %1730 = vmatprep.mubr.f32.mxu0 %v1152
        %1731 = vmatmul.mubr.f32.gmra.mrb[0].mxu0 %v1151
        %v1732 = vpop.f32.mrb[0].mxu0
        %v1733 = vadd.f32 0.0, %v1732
        %v1734 = vpop.f32.mrb[0].mxu0
        %v1735 = vadd.f32 0.0, %v1734
        %1736 = vdwg.mxu0
        %1737 = vmatprep.subr.mxu0 %v1535
        %1738 = vmatpush1.msra.mxu0 %v1534
        %1739 = vmatprep.subr.mxu0 %v1539
        %1740 = vmatpush1.msra.mxu0 %v1538
        %1741 = vmatprep.subr.mxu0 %v1543
        %1742 = vmatpush1.msra.mxu0 %v1542
        %1743 = vmatprep.subr.mxu0 %v1547
        %1744 = vmatpush1.msra.mxu0 %v1546
        %1745 = vmatprep.subr.mxu0 %v1551
        %1746 = vmatpush1.msra.mxu0 %v1550
        %1747 = vmatprep.subr.mxu0 %v1555
        %1748 = vmatpush1.msra.mxu0 %v1554
        %1749 = vmatprep.subr.mxu0 %v1559
        %1750 = vmatpush1.msra.mxu0 %v1558
        %1751 = vmatprep.subr.mxu0 %v1563
        %1752 = vmatpush1.msra.mxu0 %v1562
        %1753 = vmatprep.subr.mxu0 %v1567
        %1754 = vmatpush1.msra.mxu0 %v1566
        %1755 = vmatprep.subr.mxu0 %v1571
        %1756 = vmatpush1.msra.mxu0 %v1570
        %1757 = vmatprep.subr.mxu0 %v1575
        %1758 = vmatpush1.msra.mxu0 %v1574
        %1759 = vmatprep.subr.mxu0 %v1579
        %1760 = vmatpush1.msra.mxu0 %v1578
        %1761 = vmatprep.subr.mxu0 %v1583
        %1762 = vmatpush1.msra.mxu0 %v1582
        %1763 = vmatprep.subr.mxu0 %v1587
        %1764 = vmatpush1.msra.mxu0 %v1586
        %1765 = vmatprep.subr.mxu0 %v1591
        %1766 = vmatpush1.msra.mxu0 %v1590
        %1767 = vmatprep.subr.mxu0 %v1595
        %1768 = vmatpush1.msra.mxu0 %v1594
        %1769 = vmatprep.subr.mxu0 %v1599
        %1770 = vmatpush1.msra.mxu0 %v1598
        %1771 = vmatprep.subr.mxu0 %v1603
        %1772 = vmatpush1.msra.mxu0 %v1602
        %1773 = vmatprep.subr.mxu0 %v1607
        %1774 = vmatpush1.msra.mxu0 %v1606
        %1775 = vmatprep.subr.mxu0 %v1611
        %1776 = vmatpush1.msra.mxu0 %v1610
        %1777 = vmatprep.subr.mxu0 %v1615
        %1778 = vmatpush1.msra.mxu0 %v1614
        %1779 = vmatprep.subr.mxu0 %v1619
        %1780 = vmatpush1.msra.mxu0 %v1618
        %1781 = vmatprep.subr.mxu0 %v1623
        %1782 = vmatpush1.msra.mxu0 %v1622
        %1783 = vmatprep.subr.mxu0 %v1627
        %1784 = vmatpush1.msra.mxu0 %v1626
        %1785 = vmatprep.subr.mxu0 %v1631
        %1786 = vmatpush1.msra.mxu0 %v1630
        %1787 = vmatprep.subr.mxu0 %v1635
        %1788 = vmatpush1.msra.mxu0 %v1634
        %1789 = vmatprep.subr.mxu0 %v1639
        %1790 = vmatpush1.msra.mxu0 %v1638
        %1791 = vmatprep.subr.mxu0 %v1643
        %1792 = vmatpush1.msra.mxu0 %v1642
        %1793 = vmatprep.subr.mxu0 %v1647
        %1794 = vmatpush1.msra.mxu0 %v1646
        %1795 = vmatprep.subr.mxu0 %v1651
        %1796 = vmatpush1.msra.mxu0 %v1650
        %1797 = vmatprep.subr.mxu0 %v1655
        %1798 = vmatpush1.msra.mxu0 %v1654
        %1799 = vmatprep.subr.mxu0 %v1659
        %1800 = vmatpush1.msra.mxu0 %v1658
        %1801 = vmatprep.mubr.f32.mxu0 %v1150
        %1802 = vmatmul.mubr.f32.gmra.mrb[0].mxu0 %v1149
        %v1803 = vpop.f32.mrb[0].mxu0
        %v1804 = vadd.f32 0.0, %v1803
        %v1805 = vpop.f32.mrb[0].mxu0
        %v1806 = vadd.f32 0.0, %v1805
        %1807 = vmatprep.mubr.f32.mxu0 %v1152
        %1808 = vmatmul.mubr.f32.gmra.mrb[0].mxu0 %v1151
        %v1809 = vpop.f32.mrb[0].mxu0
        %v1810 = vadd.f32 0.0, %v1809
        %v1811 = vpop.f32.mrb[0].mxu0
        %v1812 = vadd.f32 0.0, %v1811
        %1813 = vdwg.mxu0
        %v1814 = vsel %vm1191, %v1727, 0.0
        %v1815 = vsel %vm1192, %v1729, 0.0
        %v1816 = vsel %vm1193, %v1804, 0.0
        %v1817 = vsel %vm1194, %v1806, 0.0
        %v1818 = vsel %vm1195, %v1733, 0.0
        %v1819 = vsel %vm1196, %v1735, 0.0
        %v1820 = vsel %vm1197, %v1810, 0.0
        %v1821 = vsel %vm1198, %v1812, 0.0
        %v1822 = vadd.f32 %v1814, %v1818
        %v1823 = vrot.slane %v1822, 4
        %v1824 = vadd.f32 %v1822, %v1823
        %v1825 = vrot.slane %v1824, 2
        %v1826 = vadd.f32 %v1824, %v1825
        %v1827 = vrot.slane %v1826, 1
        %v1828 = vadd.f32 %v1826, %v1827
        %v1829 = vadd.f32 %v1815, %v1819
        %v1830 = vrot.slane %v1829, 4
        %v1831 = vadd.f32 %v1829, %v1830
        %v1832 = vrot.slane %v1831, 2
        %v1833 = vadd.f32 %v1831, %v1832
        %v1834 = vrot.slane %v1833, 1
        %v1835 = vadd.f32 %v1833, %v1834
        %v1836 = vadd.f32 %v1816, %v1820
        %v1837 = vrot.slane %v1836, 4
        %v1838 = vadd.f32 %v1836, %v1837
        %v1839 = vrot.slane %v1838, 2
        %v1840 = vadd.f32 %v1838, %v1839
        %v1841 = vrot.slane %v1840, 1
        %v1842 = vadd.f32 %v1840, %v1841
        %v1843 = vadd.f32 %v1817, %v1821
        %v1844 = vrot.slane %v1843, 4
        %v1845 = vadd.f32 %v1843, %v1844
        %v1846 = vrot.slane %v1845, 2
        %v1847 = vadd.f32 %v1845, %v1846
        %v1848 = vrot.slane %v1847, 1
        %v1849 = vadd.f32 %v1847, %v1848
        %v1850 = vadd.f32 %v1828, %v1842
        %v1851 = vadd.f32 %v1835, %v1849
        %v1852 = vadd.f32 %v1850, %v1851
        %1854 = vrot.lane.b32.xlu0 %v1852, 64
        %v1855 = vpop.permute.xlu0 %1854
        %v1857 = vadd.f32 %v1852, %v1855
        %1859 = vrot.lane.b32.xlu0 %v1857, 96
        %v1860 = vpop.permute.xlu0 %1859
        %v1862 = vadd.f32 %v1857, %v1860
        %v1863 = vadd.f32 %v1531, %v1862
        %v1864 = vld [vmem:[#allocation5 + $0x40] sm:$0xff]
        %v1865 = vld [vmem:[#allocation5 + $0x48] sm:$0xff]
        %v1866 = vld [vmem:[#allocation5 + $0x50] sm:$0xff]
        %v1867 = vld [vmem:[#allocation5 + $0x58] sm:$0xff]
        %v1868 = vld [vmem:[#allocation5 + $0xc0] sm:$0xff]
        %v1869 = vld [vmem:[#allocation5 + $0xc8] sm:$0xff]
        %v1870 = vld [vmem:[#allocation5 + $0xd0] sm:$0xff]
        %v1871 = vld [vmem:[#allocation5 + $0xd8] sm:$0xff]
        %v1872 = vld [vmem:[#allocation5 + $0x140] sm:$0xff]
        %v1873 = vld [vmem:[#allocation5 + $0x148] sm:$0xff]
        %v1874 = vld [vmem:[#allocation5 + $0x150] sm:$0xff]
        %v1875 = vld [vmem:[#allocation5 + $0x158] sm:$0xff]
        %v1876 = vld [vmem:[#allocation5 + $0x1c0] sm:$0xff]
        %v1877 = vld [vmem:[#allocation5 + $0x1c8] sm:$0xff]
        %v1878 = vld [vmem:[#allocation5 + $0x1d0] sm:$0xff]
        %v1879 = vld [vmem:[#allocation5 + $0x1d8] sm:$0xff]
        %v1880 = vld [vmem:[#allocation5 + $0x240] sm:$0xff]
        %v1881 = vld [vmem:[#allocation5 + $0x248] sm:$0xff]
        %v1882 = vld [vmem:[#allocation5 + $0x250] sm:$0xff]
        %v1883 = vld [vmem:[#allocation5 + $0x258] sm:$0xff]
        %v1884 = vld [vmem:[#allocation5 + $0x2c0] sm:$0xff]
        %v1885 = vld [vmem:[#allocation5 + $0x2c8] sm:$0xff]
        %v1886 = vld [vmem:[#allocation5 + $0x2d0] sm:$0xff]
        %v1887 = vld [vmem:[#allocation5 + $0x2d8] sm:$0xff]
        %v1888 = vld [vmem:[#allocation5 + $0x340] sm:$0xff]
        %v1889 = vld [vmem:[#allocation5 + $0x348] sm:$0xff]
        %v1890 = vld [vmem:[#allocation5 + $0x350] sm:$0xff]
        %v1891 = vld [vmem:[#allocation5 + $0x358] sm:$0xff]
        %v1892 = vld [vmem:[#allocation5 + $0x3c0] sm:$0xff]
        %v1893 = vld [vmem:[#allocation5 + $0x3c8] sm:$0xff]
        %v1894 = vld [vmem:[#allocation5 + $0x3d0] sm:$0xff]
        %v1895 = vld [vmem:[#allocation5 + $0x3d8] sm:$0xff]
        %v1896 = vld [vmem:[#allocation5 + $0x440] sm:$0xff]
        %v1897 = vld [vmem:[#allocation5 + $0x448] sm:$0xff]
        %v1898 = vld [vmem:[#allocation5 + $0x450] sm:$0xff]
        %v1899 = vld [vmem:[#allocation5 + $0x458] sm:$0xff]
        %v1900 = vld [vmem:[#allocation5 + $0x4c0] sm:$0xff]
        %v1901 = vld [vmem:[#allocation5 + $0x4c8] sm:$0xff]
        %v1902 = vld [vmem:[#allocation5 + $0x4d0] sm:$0xff]
        %v1903 = vld [vmem:[#allocation5 + $0x4d8] sm:$0xff]
        %v1904 = vld [vmem:[#allocation5 + $0x540] sm:$0xff]
        %v1905 = vld [vmem:[#allocation5 + $0x548] sm:$0xff]
        %v1906 = vld [vmem:[#allocation5 + $0x550] sm:$0xff]
        %v1907 = vld [vmem:[#allocation5 + $0x558] sm:$0xff]
        %v1908 = vld [vmem:[#allocation5 + $0x5c0] sm:$0xff]
        %v1909 = vld [vmem:[#allocation5 + $0x5c8] sm:$0xff]
        %v1910 = vld [vmem:[#allocation5 + $0x5d0] sm:$0xff]
        %v1911 = vld [vmem:[#allocation5 + $0x5d8] sm:$0xff]
        %v1912 = vld [vmem:[#allocation5 + $0x640] sm:$0xff]
        %v1913 = vld [vmem:[#allocation5 + $0x648] sm:$0xff]
        %v1914 = vld [vmem:[#allocation5 + $0x650] sm:$0xff]
        %v1915 = vld [vmem:[#allocation5 + $0x658] sm:$0xff]
        %v1916 = vld [vmem:[#allocation5 + $0x6c0] sm:$0xff]
        %v1917 = vld [vmem:[#allocation5 + $0x6c8] sm:$0xff]
        %v1918 = vld [vmem:[#allocation5 + $0x6d0] sm:$0xff]
        %v1919 = vld [vmem:[#allocation5 + $0x6d8] sm:$0xff]
        %v1920 = vld [vmem:[#allocation5 + $0x740] sm:$0xff]
        %v1921 = vld [vmem:[#allocation5 + $0x748] sm:$0xff]
        %v1922 = vld [vmem:[#allocation5 + $0x750] sm:$0xff]
        %v1923 = vld [vmem:[#allocation5 + $0x758] sm:$0xff]
        %v1924 = vld [vmem:[#allocation5 + $0x7c0] sm:$0xff]
        %v1925 = vld [vmem:[#allocation5 + $0x7c8] sm:$0xff]
        %v1926 = vld [vmem:[#allocation5 + $0x7d0] sm:$0xff]
        %v1927 = vld [vmem:[#allocation5 + $0x7d8] sm:$0xff]
        %v1928 = vld [vmem:[#allocation5 + $0x840] sm:$0xff]
        %v1929 = vld [vmem:[#allocation5 + $0x848] sm:$0xff]
        %v1930 = vld [vmem:[#allocation5 + $0x850] sm:$0xff]
        %v1931 = vld [vmem:[#allocation5 + $0x858] sm:$0xff]
        %v1932 = vld [vmem:[#allocation5 + $0x8c0] sm:$0xff]
        %v1933 = vld [vmem:[#allocation5 + $0x8c8] sm:$0xff]
        %v1934 = vld [vmem:[#allocation5 + $0x8d0] sm:$0xff]
        %v1935 = vld [vmem:[#allocation5 + $0x8d8] sm:$0xff]
        %v1936 = vld [vmem:[#allocation5 + $0x940] sm:$0xff]
        %v1937 = vld [vmem:[#allocation5 + $0x948] sm:$0xff]
        %v1938 = vld [vmem:[#allocation5 + $0x950] sm:$0xff]
        %v1939 = vld [vmem:[#allocation5 + $0x958] sm:$0xff]
        %v1940 = vld [vmem:[#allocation5 + $0x9c0] sm:$0xff]
        %v1941 = vld [vmem:[#allocation5 + $0x9c8] sm:$0xff]
        %v1942 = vld [vmem:[#allocation5 + $0x9d0] sm:$0xff]
        %v1943 = vld [vmem:[#allocation5 + $0x9d8] sm:$0xff]
        %v1944 = vld [vmem:[#allocation5 + $0xa40] sm:$0xff]
        %v1945 = vld [vmem:[#allocation5 + $0xa48] sm:$0xff]
        %v1946 = vld [vmem:[#allocation5 + $0xa50] sm:$0xff]
        %v1947 = vld [vmem:[#allocation5 + $0xa58] sm:$0xff]
        %v1948 = vld [vmem:[#allocation5 + $0xac0] sm:$0xff]
        %v1949 = vld [vmem:[#allocation5 + $0xac8] sm:$0xff]
        %v1950 = vld [vmem:[#allocation5 + $0xad0] sm:$0xff]
        %v1951 = vld [vmem:[#allocation5 + $0xad8] sm:$0xff]
        %v1952 = vld [vmem:[#allocation5 + $0xb40] sm:$0xff]
        %v1953 = vld [vmem:[#allocation5 + $0xb48] sm:$0xff]
        %v1954 = vld [vmem:[#allocation5 + $0xb50] sm:$0xff]
        %v1955 = vld [vmem:[#allocation5 + $0xb58] sm:$0xff]
        %v1956 = vld [vmem:[#allocation5 + $0xbc0] sm:$0xff]
        %v1957 = vld [vmem:[#allocation5 + $0xbc8] sm:$0xff]
        %v1958 = vld [vmem:[#allocation5 + $0xbd0] sm:$0xff]
        %v1959 = vld [vmem:[#allocation5 + $0xbd8] sm:$0xff]
        %v1960 = vld [vmem:[#allocation5 + $0xc40] sm:$0xff]
        %v1961 = vld [vmem:[#allocation5 + $0xc48] sm:$0xff]
        %v1962 = vld [vmem:[#allocation5 + $0xc50] sm:$0xff]
        %v1963 = vld [vmem:[#allocation5 + $0xc58] sm:$0xff]
        %v1964 = vld [vmem:[#allocation5 + $0xcc0] sm:$0xff]
        %v1965 = vld [vmem:[#allocation5 + $0xcc8] sm:$0xff]
        %v1966 = vld [vmem:[#allocation5 + $0xcd0] sm:$0xff]
        %v1967 = vld [vmem:[#allocation5 + $0xcd8] sm:$0xff]
        %v1968 = vld [vmem:[#allocation5 + $0xd40] sm:$0xff]
        %v1969 = vld [vmem:[#allocation5 + $0xd48] sm:$0xff]
        %v1970 = vld [vmem:[#allocation5 + $0xd50] sm:$0xff]
        %v1971 = vld [vmem:[#allocation5 + $0xd58] sm:$0xff]
        %v1972 = vld [vmem:[#allocation5 + $0xdc0] sm:$0xff]
        %v1973 = vld [vmem:[#allocation5 + $0xdc8] sm:$0xff]
        %v1974 = vld [vmem:[#allocation5 + $0xdd0] sm:$0xff]
        %v1975 = vld [vmem:[#allocation5 + $0xdd8] sm:$0xff]
        %v1976 = vld [vmem:[#allocation5 + $0xe40] sm:$0xff]
        %v1977 = vld [vmem:[#allocation5 + $0xe48] sm:$0xff]
        %v1978 = vld [vmem:[#allocation5 + $0xe50] sm:$0xff]
        %v1979 = vld [vmem:[#allocation5 + $0xe58] sm:$0xff]
        %v1980 = vld [vmem:[#allocation5 + $0xec0] sm:$0xff]
        %v1981 = vld [vmem:[#allocation5 + $0xec8] sm:$0xff]
        %v1982 = vld [vmem:[#allocation5 + $0xed0] sm:$0xff]
        %v1983 = vld [vmem:[#allocation5 + $0xed8] sm:$0xff]
        %v1984 = vld [vmem:[#allocation5 + $0xf40] sm:$0xff]
        %v1985 = vld [vmem:[#allocation5 + $0xf48] sm:$0xff]
        %v1986 = vld [vmem:[#allocation5 + $0xf50] sm:$0xff]
        %v1987 = vld [vmem:[#allocation5 + $0xf58] sm:$0xff]
        %v1988 = vld [vmem:[#allocation5 + $0xfc0] sm:$0xff]
        %v1989 = vld [vmem:[#allocation5 + $0xfc8] sm:$0xff]
        %v1990 = vld [vmem:[#allocation5 + $0xfd0] sm:$0xff]
        %v1991 = vld [vmem:[#allocation5 + $0xfd8] sm:$0xff]
        %1992 = vmatprep.subr.mxu0 %v1865
        %1993 = vmatpush1.msra.mxu0 %v1864
        %1994 = vmatprep.subr.mxu0 %v1869
        %1995 = vmatpush1.msra.mxu0 %v1868
        %1996 = vmatprep.subr.mxu0 %v1873
        %1997 = vmatpush1.msra.mxu0 %v1872
        %1998 = vmatprep.subr.mxu0 %v1877
        %1999 = vmatpush1.msra.mxu0 %v1876
        %2000 = vmatprep.subr.mxu0 %v1881
        %2001 = vmatpush1.msra.mxu0 %v1880
        %2002 = vmatprep.subr.mxu0 %v1885
        %2003 = vmatpush1.msra.mxu0 %v1884
        %2004 = vmatprep.subr.mxu0 %v1889
        %2005 = vmatpush1.msra.mxu0 %v1888
        %2006 = vmatprep.subr.mxu0 %v1893
        %2007 = vmatpush1.msra.mxu0 %v1892
        %2008 = vmatprep.subr.mxu0 %v1897
        %2009 = vmatpush1.msra.mxu0 %v1896
        %2010 = vmatprep.subr.mxu0 %v1901
        %2011 = vmatpush1.msra.mxu0 %v1900
        %2012 = vmatprep.subr.mxu0 %v1905
        %2013 = vmatpush1.msra.mxu0 %v1904
        %2014 = vmatprep.subr.mxu0 %v1909
        %2015 = vmatpush1.msra.mxu0 %v1908
        %2016 = vmatprep.subr.mxu0 %v1913
        %2017 = vmatpush1.msra.mxu0 %v1912
        %2018 = vmatprep.subr.mxu0 %v1917
        %2019 = vmatpush1.msra.mxu0 %v1916
        %2020 = vmatprep.subr.mxu0 %v1921
        %2021 = vmatpush1.msra.mxu0 %v1920
        %2022 = vmatprep.subr.mxu0 %v1925
        %2023 = vmatpush1.msra.mxu0 %v1924
        %2024 = vmatprep.subr.mxu0 %v1929
        %2025 = vmatpush1.msra.mxu0 %v1928
        %2026 = vmatprep.subr.mxu0 %v1933
        %2027 = vmatpush1.msra.mxu0 %v1932
        %2028 = vmatprep.subr.mxu0 %v1937
        %2029 = vmatpush1.msra.mxu0 %v1936
        %2030 = vmatprep.subr.mxu0 %v1941
        %2031 = vmatpush1.msra.mxu0 %v1940
        %2032 = vmatprep.subr.mxu0 %v1945
        %2033 = vmatpush1.msra.mxu0 %v1944
        %2034 = vmatprep.subr.mxu0 %v1949
        %2035 = vmatpush1.msra.mxu0 %v1948
        %2036 = vmatprep.subr.mxu0 %v1953
        %2037 = vmatpush1.msra.mxu0 %v1952
        %2038 = vmatprep.subr.mxu0 %v1957
        %2039 = vmatpush1.msra.mxu0 %v1956
        %2040 = vmatprep.subr.mxu0 %v1961
        %2041 = vmatpush1.msra.mxu0 %v1960
        %2042 = vmatprep.subr.mxu0 %v1965
        %2043 = vmatpush1.msra.mxu0 %v1964
        %2044 = vmatprep.subr.mxu0 %v1969
        %2045 = vmatpush1.msra.mxu0 %v1968
        %2046 = vmatprep.subr.mxu0 %v1973
        %2047 = vmatpush1.msra.mxu0 %v1972
        %2048 = vmatprep.subr.mxu0 %v1977
        %2049 = vmatpush1.msra.mxu0 %v1976
        %2050 = vmatprep.subr.mxu0 %v1981
        %2051 = vmatpush1.msra.mxu0 %v1980
        %2052 = vmatprep.subr.mxu0 %v1985
        %2053 = vmatpush1.msra.mxu0 %v1984
        %2054 = vmatprep.subr.mxu0 %v1989
        %2055 = vmatpush1.msra.mxu0 %v1988
        %2056 = vmatprep.mubr.f32.mxu0 %v1154
        %2057 = vmatmul.mubr.f32.gmra.mrb[0].mxu0 %v1153
        %v2058 = vpop.f32.mrb[0].mxu0
        %v2059 = vadd.f32 0.0, %v2058
        %v2060 = vpop.f32.mrb[0].mxu0
        %v2061 = vadd.f32 0.0, %v2060
        %2062 = vmatprep.mubr.f32.mxu0 %v1156
        %2063 = vmatmul.mubr.f32.gmra.mrb[0].mxu0 %v1155
        %v2064 = vpop.f32.mrb[0].mxu0
        %v2065 = vadd.f32 0.0, %v2064
        %v2066 = vpop.f32.mrb[0].mxu0
        %v2067 = vadd.f32 0.0, %v2066
        %2068 = vdwg.mxu0
        %2069 = vmatprep.subr.mxu0 %v1867
        %2070 = vmatpush1.msra.mxu0 %v1866
        %2071 = vmatprep.subr.mxu0 %v1871
        %2072 = vmatpush1.msra.mxu0 %v1870
        %2073 = vmatprep.subr.mxu0 %v1875
        %2074 = vmatpush1.msra.mxu0 %v1874
        %2075 = vmatprep.subr.mxu0 %v1879
        %2076 = vmatpush1.msra.mxu0 %v1878
        %2077 = vmatprep.subr.mxu0 %v1883
        %2078 = vmatpush1.msra.mxu0 %v1882
        %2079 = vmatprep.subr.mxu0 %v1887
        %2080 = vmatpush1.msra.mxu0 %v1886
        %2081 = vmatprep.subr.mxu0 %v1891
        %2082 = vmatpush1.msra.mxu0 %v1890
        %2083 = vmatprep.subr.mxu0 %v1895
        %2084 = vmatpush1.msra.mxu0 %v1894
        %2085 = vmatprep.subr.mxu0 %v1899
        %2086 = vmatpush1.msra.mxu0 %v1898
        %2087 = vmatprep.subr.mxu0 %v1903
        %2088 = vmatpush1.msra.mxu0 %v1902
        %2089 = vmatprep.subr.mxu0 %v1907
        %2090 = vmatpush1.msra.mxu0 %v1906
        %2091 = vmatprep.subr.mxu0 %v1911
        %2092 = vmatpush1.msra.mxu0 %v1910
        %2093 = vmatprep.subr.mxu0 %v1915
        %2094 = vmatpush1.msra.mxu0 %v1914
        %2095 = vmatprep.subr.mxu0 %v1919
        %2096 = vmatpush1.msra.mxu0 %v1918
        %2097 = vmatprep.subr.mxu0 %v1923
        %2098 = vmatpush1.msra.mxu0 %v1922
        %2099 = vmatprep.subr.mxu0 %v1927
        %2100 = vmatpush1.msra.mxu0 %v1926
        %2101 = vmatprep.subr.mxu0 %v1931
        %2102 = vmatpush1.msra.mxu0 %v1930
        %2103 = vmatprep.subr.mxu0 %v1935
        %2104 = vmatpush1.msra.mxu0 %v1934
        %2105 = vmatprep.subr.mxu0 %v1939
        %2106 = vmatpush1.msra.mxu0 %v1938
        %2107 = vmatprep.subr.mxu0 %v1943
        %2108 = vmatpush1.msra.mxu0 %v1942
        %2109 = vmatprep.subr.mxu0 %v1947
        %2110 = vmatpush1.msra.mxu0 %v1946
        %2111 = vmatprep.subr.mxu0 %v1951
        %2112 = vmatpush1.msra.mxu0 %v1950
        %2113 = vmatprep.subr.mxu0 %v1955
        %2114 = vmatpush1.msra.mxu0 %v1954
        %2115 = vmatprep.subr.mxu0 %v1959
        %2116 = vmatpush1.msra.mxu0 %v1958
        %2117 = vmatprep.subr.mxu0 %v1963
        %2118 = vmatpush1.msra.mxu0 %v1962
        %2119 = vmatprep.subr.mxu0 %v1967
        %2120 = vmatpush1.msra.mxu0 %v1966
        %2121 = vmatprep.subr.mxu0 %v1971
        %2122 = vmatpush1.msra.mxu0 %v1970
        %2123 = vmatprep.subr.mxu0 %v1975
        %2124 = vmatpush1.msra.mxu0 %v1974
        %2125 = vmatprep.subr.mxu0 %v1979
        %2126 = vmatpush1.msra.mxu0 %v1978
        %2127 = vmatprep.subr.mxu0 %v1983
        %2128 = vmatpush1.msra.mxu0 %v1982
        %2129 = vmatprep.subr.mxu0 %v1987
        %2130 = vmatpush1.msra.mxu0 %v1986
        %2131 = vmatprep.subr.mxu0 %v1991
        %2132 = vmatpush1.msra.mxu0 %v1990
        %2133 = vmatprep.mubr.f32.mxu0 %v1154
        %2134 = vmatmul.mubr.f32.gmra.mrb[0].mxu0 %v1153
        %v2135 = vpop.f32.mrb[0].mxu0
        %v2136 = vadd.f32 0.0, %v2135
        %v2137 = vpop.f32.mrb[0].mxu0
        %v2138 = vadd.f32 0.0, %v2137
        %2139 = vmatprep.mubr.f32.mxu0 %v1156
        %2140 = vmatmul.mubr.f32.gmra.mrb[0].mxu0 %v1155
        %v2141 = vpop.f32.mrb[0].mxu0
        %v2142 = vadd.f32 0.0, %v2141
        %v2143 = vpop.f32.mrb[0].mxu0
        %v2144 = vadd.f32 0.0, %v2143
        %2145 = vdwg.mxu0
        %v2146 = vsel %vm1191, %v2059, 0.0
        %v2147 = vsel %vm1192, %v2061, 0.0
        %v2148 = vsel %vm1193, %v2136, 0.0
        %v2149 = vsel %vm1194, %v2138, 0.0
        %v2150 = vsel %vm1195, %v2065, 0.0
        %v2151 = vsel %vm1196, %v2067, 0.0
        %v2152 = vsel %vm1197, %v2142, 0.0
        %v2153 = vsel %vm1198, %v2144, 0.0
        %v2154 = vadd.f32 %v2146, %v2150
        %v2155 = vrot.slane %v2154, 4
        %v2156 = vadd.f32 %v2154, %v2155
        %v2157 = vrot.slane %v2156, 2
        %v2158 = vadd.f32 %v2156, %v2157
        %v2159 = vrot.slane %v2158, 1
        %v2160 = vadd.f32 %v2158, %v2159
        %v2161 = vadd.f32 %v2147, %v2151
        %v2162 = vrot.slane %v2161, 4
        %v2163 = vadd.f32 %v2161, %v2162
        %v2164 = vrot.slane %v2163, 2
        %v2165 = vadd.f32 %v2163, %v2164
        %v2166 = vrot.slane %v2165, 1
        %v2167 = vadd.f32 %v2165, %v2166
        %v2168 = vadd.f32 %v2148, %v2152
        %v2169 = vrot.slane %v2168, 4
        %v2170 = vadd.f32 %v2168, %v2169
        %v2171 = vrot.slane %v2170, 2
        %v2172 = vadd.f32 %v2170, %v2171
        %v2173 = vrot.slane %v2172, 1
        %v2174 = vadd.f32 %v2172, %v2173
        %v2175 = vadd.f32 %v2149, %v2153
        %v2176 = vrot.slane %v2175, 4
        %v2177 = vadd.f32 %v2175, %v2176
        %v2178 = vrot.slane %v2177, 2
        %v2179 = vadd.f32 %v2177, %v2178
        %v2180 = vrot.slane %v2179, 1
        %v2181 = vadd.f32 %v2179, %v2180
        %v2182 = vadd.f32 %v2160, %v2174
        %v2183 = vadd.f32 %v2167, %v2181
        %v2184 = vadd.f32 %v2182, %v2183
        %2186 = vrot.lane.b32.xlu0 %v2184, 64
        %v2187 = vpop.permute.xlu0 %2186
        %v2189 = vadd.f32 %v2184, %v2187
        %2191 = vrot.lane.b32.xlu0 %v2189, 96
        %v2192 = vpop.permute.xlu0 %2191
        %v2194 = vadd.f32 %v2189, %v2192
        %v2195 = vadd.f32 %v1863, %v2194
        %v2196 = vld [vmem:[#allocation5 + $0x60] sm:$0xff]
        %v2197 = vld [vmem:[#allocation5 + $0x68] sm:$0xff]
        %v2198 = vld [vmem:[#allocation5 + $0x70] sm:$0xff]
        %v2199 = vld [vmem:[#allocation5 + $0x78] sm:$0xff]
        %v2200 = vld [vmem:[#allocation5 + $0xe0] sm:$0xff]
        %v2201 = vld [vmem:[#allocation5 + $0xe8] sm:$0xff]
        %v2202 = vld [vmem:[#allocation5 + $0xf0] sm:$0xff]
        %v2203 = vld [vmem:[#allocation5 + $0xf8] sm:$0xff]
        %v2204 = vld [vmem:[#allocation5 + $0x160] sm:$0xff]
        %v2205 = vld [vmem:[#allocation5 + $0x168] sm:$0xff]
        %v2206 = vld [vmem:[#allocation5 + $0x170] sm:$0xff]
        %v2207 = vld [vmem:[#allocation5 + $0x178] sm:$0xff]
        %v2208 = vld [vmem:[#allocation5 + $0x1e0] sm:$0xff]
        %v2209 = vld [vmem:[#allocation5 + $0x1e8] sm:$0xff]
        %v2210 = vld [vmem:[#allocation5 + $0x1f0] sm:$0xff]
        %v2211 = vld [vmem:[#allocation5 + $0x1f8] sm:$0xff]
        %v2212 = vld [vmem:[#allocation5 + $0x260] sm:$0xff]
        %v2213 = vld [vmem:[#allocation5 + $0x268] sm:$0xff]
        %v2214 = vld [vmem:[#allocation5 + $0x270] sm:$0xff]
        %v2215 = vld [vmem:[#allocation5 + $0x278] sm:$0xff]
        %v2216 = vld [vmem:[#allocation5 + $0x2e0] sm:$0xff]
        %v2217 = vld [vmem:[#allocation5 + $0x2e8] sm:$0xff]
        %v2218 = vld [vmem:[#allocation5 + $0x2f0] sm:$0xff]
        %v2219 = vld [vmem:[#allocation5 + $0x2f8] sm:$0xff]
        %v2220 = vld [vmem:[#allocation5 + $0x360] sm:$0xff]
        %v2221 = vld [vmem:[#allocation5 + $0x368] sm:$0xff]
        %v2222 = vld [vmem:[#allocation5 + $0x370] sm:$0xff]
        %v2223 = vld [vmem:[#allocation5 + $0x378] sm:$0xff]
        %v2224 = vld [vmem:[#allocation5 + $0x3e0] sm:$0xff]
        %v2225 = vld [vmem:[#allocation5 + $0x3e8] sm:$0xff]
        %v2226 = vld [vmem:[#allocation5 + $0x3f0] sm:$0xff]
        %v2227 = vld [vmem:[#allocation5 + $0x3f8] sm:$0xff]
        %v2228 = vld [vmem:[#allocation5 + $0x460] sm:$0xff]
        %v2229 = vld [vmem:[#allocation5 + $0x468] sm:$0xff]
        %v2230 = vld [vmem:[#allocation5 + $0x470] sm:$0xff]
        %v2231 = vld [vmem:[#allocation5 + $0x478] sm:$0xff]
        %v2232 = vld [vmem:[#allocation5 + $0x4e0] sm:$0xff]
        %v2233 = vld [vmem:[#allocation5 + $0x4e8] sm:$0xff]
        %v2234 = vld [vmem:[#allocation5 + $0x4f0] sm:$0xff]
        %v2235 = vld [vmem:[#allocation5 + $0x4f8] sm:$0xff]
        %v2236 = vld [vmem:[#allocation5 + $0x560] sm:$0xff]
        %v2237 = vld [vmem:[#allocation5 + $0x568] sm:$0xff]
        %v2238 = vld [vmem:[#allocation5 + $0x570] sm:$0xff]
        %v2239 = vld [vmem:[#allocation5 + $0x578] sm:$0xff]
        %v2240 = vld [vmem:[#allocation5 + $0x5e0] sm:$0xff]
        %v2241 = vld [vmem:[#allocation5 + $0x5e8] sm:$0xff]
        %v2242 = vld [vmem:[#allocation5 + $0x5f0] sm:$0xff]
        %v2243 = vld [vmem:[#allocation5 + $0x5f8] sm:$0xff]
        %v2244 = vld [vmem:[#allocation5 + $0x660] sm:$0xff]
        %v2245 = vld [vmem:[#allocation5 + $0x668] sm:$0xff]
        %v2246 = vld [vmem:[#allocation5 + $0x670] sm:$0xff]
        %v2247 = vld [vmem:[#allocation5 + $0x678] sm:$0xff]
        %v2248 = vld [vmem:[#allocation5 + $0x6e0] sm:$0xff]
        %v2249 = vld [vmem:[#allocation5 + $0x6e8] sm:$0xff]
        %v2250 = vld [vmem:[#allocation5 + $0x6f0] sm:$0xff]
        %v2251 = vld [vmem:[#allocation5 + $0x6f8] sm:$0xff]
        %v2252 = vld [vmem:[#allocation5 + $0x760] sm:$0xff]
        %v2253 = vld [vmem:[#allocation5 + $0x768] sm:$0xff]
        %v2254 = vld [vmem:[#allocation5 + $0x770] sm:$0xff]
        %v2255 = vld [vmem:[#allocation5 + $0x778] sm:$0xff]
        %v2256 = vld [vmem:[#allocation5 + $0x7e0] sm:$0xff]
        %v2257 = vld [vmem:[#allocation5 + $0x7e8] sm:$0xff]
        %v2258 = vld [vmem:[#allocation5 + $0x7f0] sm:$0xff]
        %v2259 = vld [vmem:[#allocation5 + $0x7f8] sm:$0xff]
        %v2260 = vld [vmem:[#allocation5 + $0x860] sm:$0xff]
        %v2261 = vld [vmem:[#allocation5 + $0x868] sm:$0xff]
        %v2262 = vld [vmem:[#allocation5 + $0x870] sm:$0xff]
        %v2263 = vld [vmem:[#allocation5 + $0x878] sm:$0xff]
        %v2264 = vld [vmem:[#allocation5 + $0x8e0] sm:$0xff]
        %v2265 = vld [vmem:[#allocation5 + $0x8e8] sm:$0xff]
        %v2266 = vld [vmem:[#allocation5 + $0x8f0] sm:$0xff]
        %v2267 = vld [vmem:[#allocation5 + $0x8f8] sm:$0xff]
        %v2268 = vld [vmem:[#allocation5 + $0x960] sm:$0xff]
        %v2269 = vld [vmem:[#allocation5 + $0x968] sm:$0xff]
        %v2270 = vld [vmem:[#allocation5 + $0x970] sm:$0xff]
        %v2271 = vld [vmem:[#allocation5 + $0x978] sm:$0xff]
        %v2272 = vld [vmem:[#allocation5 + $0x9e0] sm:$0xff]
        %v2273 = vld [vmem:[#allocation5 + $0x9e8] sm:$0xff]
        %v2274 = vld [vmem:[#allocation5 + $0x9f0] sm:$0xff]
        %v2275 = vld [vmem:[#allocation5 + $0x9f8] sm:$0xff]
        %v2276 = vld [vmem:[#allocation5 + $0xa60] sm:$0xff]
        %v2277 = vld [vmem:[#allocation5 + $0xa68] sm:$0xff]
        %v2278 = vld [vmem:[#allocation5 + $0xa70] sm:$0xff]
        %v2279 = vld [vmem:[#allocation5 + $0xa78] sm:$0xff]
        %v2280 = vld [vmem:[#allocation5 + $0xae0] sm:$0xff]
        %v2281 = vld [vmem:[#allocation5 + $0xae8] sm:$0xff]
        %v2282 = vld [vmem:[#allocation5 + $0xaf0] sm:$0xff]
        %v2283 = vld [vmem:[#allocation5 + $0xaf8] sm:$0xff]
        %v2284 = vld [vmem:[#allocation5 + $0xb60] sm:$0xff]
        %v2285 = vld [vmem:[#allocation5 + $0xb68] sm:$0xff]
        %v2286 = vld [vmem:[#allocation5 + $0xb70] sm:$0xff]
        %v2287 = vld [vmem:[#allocation5 + $0xb78] sm:$0xff]
        %v2288 = vld [vmem:[#allocation5 + $0xbe0] sm:$0xff]
        %v2289 = vld [vmem:[#allocation5 + $0xbe8] sm:$0xff]
        %v2290 = vld [vmem:[#allocation5 + $0xbf0] sm:$0xff]
        %v2291 = vld [vmem:[#allocation5 + $0xbf8] sm:$0xff]
        %v2292 = vld [vmem:[#allocation5 + $0xc60] sm:$0xff]
        %v2293 = vld [vmem:[#allocation5 + $0xc68] sm:$0xff]
        %v2294 = vld [vmem:[#allocation5 + $0xc70] sm:$0xff]
        %v2295 = vld [vmem:[#allocation5 + $0xc78] sm:$0xff]
        %v2296 = vld [vmem:[#allocation5 + $0xce0] sm:$0xff]
        %v2297 = vld [vmem:[#allocation5 + $0xce8] sm:$0xff]
        %v2298 = vld [vmem:[#allocation5 + $0xcf0] sm:$0xff]
        %v2299 = vld [vmem:[#allocation5 + $0xcf8] sm:$0xff]
        %v2300 = vld [vmem:[#allocation5 + $0xd60] sm:$0xff]
        %v2301 = vld [vmem:[#allocation5 + $0xd68] sm:$0xff]
        %v2302 = vld [vmem:[#allocation5 + $0xd70] sm:$0xff]
        %v2303 = vld [vmem:[#allocation5 + $0xd78] sm:$0xff]
        %v2304 = vld [vmem:[#allocation5 + $0xde0] sm:$0xff]
        %v2305 = vld [vmem:[#allocation5 + $0xde8] sm:$0xff]
        %v2306 = vld [vmem:[#allocation5 + $0xdf0] sm:$0xff]
        %v2307 = vld [vmem:[#allocation5 + $0xdf8] sm:$0xff]
        %v2308 = vld [vmem:[#allocation5 + $0xe60] sm:$0xff]
        %v2309 = vld [vmem:[#allocation5 + $0xe68] sm:$0xff]
        %v2310 = vld [vmem:[#allocation5 + $0xe70] sm:$0xff]
        %v2311 = vld [vmem:[#allocation5 + $0xe78] sm:$0xff]
        %v2312 = vld [vmem:[#allocation5 + $0xee0] sm:$0xff]
        %v2313 = vld [vmem:[#allocation5 + $0xee8] sm:$0xff]
        %v2314 = vld [vmem:[#allocation5 + $0xef0] sm:$0xff]
        %v2315 = vld [vmem:[#allocation5 + $0xef8] sm:$0xff]
        %v2316 = vld [vmem:[#allocation5 + $0xf60] sm:$0xff]
        %v2317 = vld [vmem:[#allocation5 + $0xf68] sm:$0xff]
        %v2318 = vld [vmem:[#allocation5 + $0xf70] sm:$0xff]
        %v2319 = vld [vmem:[#allocation5 + $0xf78] sm:$0xff]
        %v2320 = vld [vmem:[#allocation5 + $0xfe0] sm:$0xff]
        %v2321 = vld [vmem:[#allocation5 + $0xfe8] sm:$0xff]
        %v2322 = vld [vmem:[#allocation5 + $0xff0] sm:$0xff]
        %v2323 = vld [vmem:[#allocation5 + $0xff8] sm:$0xff]
        %2324 = vmatprep.subr.mxu0 %v2197
        %2325 = vmatpush1.msra.mxu0 %v2196
        %2326 = vmatprep.subr.mxu0 %v2201
        %2327 = vmatpush1.msra.mxu0 %v2200
        %2328 = vmatprep.subr.mxu0 %v2205
        %2329 = vmatpush1.msra.mxu0 %v2204
        %2330 = vmatprep.subr.mxu0 %v2209
        %2331 = vmatpush1.msra.mxu0 %v2208
        %2332 = vmatprep.subr.mxu0 %v2213
        %2333 = vmatpush1.msra.mxu0 %v2212
        %2334 = vmatprep.subr.mxu0 %v2217
        %2335 = vmatpush1.msra.mxu0 %v2216
        %2336 = vmatprep.subr.mxu0 %v2221
        %2337 = vmatpush1.msra.mxu0 %v2220
        %2338 = vmatprep.subr.mxu0 %v2225
        %2339 = vmatpush1.msra.mxu0 %v2224
        %2340 = vmatprep.subr.mxu0 %v2229
        %2341 = vmatpush1.msra.mxu0 %v2228
        %2342 = vmatprep.subr.mxu0 %v2233
        %2343 = vmatpush1.msra.mxu0 %v2232
        %2344 = vmatprep.subr.mxu0 %v2237
        %2345 = vmatpush1.msra.mxu0 %v2236
        %2346 = vmatprep.subr.mxu0 %v2241
        %2347 = vmatpush1.msra.mxu0 %v2240
        %2348 = vmatprep.subr.mxu0 %v2245
        %2349 = vmatpush1.msra.mxu0 %v2244
        %2350 = vmatprep.subr.mxu0 %v2249
        %2351 = vmatpush1.msra.mxu0 %v2248
        %2352 = vmatprep.subr.mxu0 %v2253
        %2353 = vmatpush1.msra.mxu0 %v2252
        %2354 = vmatprep.subr.mxu0 %v2257
        %2355 = vmatpush1.msra.mxu0 %v2256
        %2356 = vmatprep.subr.mxu0 %v2261
        %2357 = vmatpush1.msra.mxu0 %v2260
        %2358 = vmatprep.subr.mxu0 %v2265
        %2359 = vmatpush1.msra.mxu0 %v2264
        %2360 = vmatprep.subr.mxu0 %v2269
        %2361 = vmatpush1.msra.mxu0 %v2268
        %2362 = vmatprep.subr.mxu0 %v2273
        %2363 = vmatpush1.msra.mxu0 %v2272
        %2364 = vmatprep.subr.mxu0 %v2277
        %2365 = vmatpush1.msra.mxu0 %v2276
        %2366 = vmatprep.subr.mxu0 %v2281
        %2367 = vmatpush1.msra.mxu0 %v2280
        %2368 = vmatprep.subr.mxu0 %v2285
        %2369 = vmatpush1.msra.mxu0 %v2284
        %2370 = vmatprep.subr.mxu0 %v2289
        %2371 = vmatpush1.msra.mxu0 %v2288
        %2372 = vmatprep.subr.mxu0 %v2293
        %2373 = vmatpush1.msra.mxu0 %v2292
        %2374 = vmatprep.subr.mxu0 %v2297
        %2375 = vmatpush1.msra.mxu0 %v2296
        %2376 = vmatprep.subr.mxu0 %v2301
        %2377 = vmatpush1.msra.mxu0 %v2300
        %2378 = vmatprep.subr.mxu0 %v2305
        %2379 = vmatpush1.msra.mxu0 %v2304
        %2380 = vmatprep.subr.mxu0 %v2309
        %2381 = vmatpush1.msra.mxu0 %v2308
        %2382 = vmatprep.subr.mxu0 %v2313
        %2383 = vmatpush1.msra.mxu0 %v2312
        %2384 = vmatprep.subr.mxu0 %v2317
        %2385 = vmatpush1.msra.mxu0 %v2316
        %2386 = vmatprep.subr.mxu0 %v2321
        %2387 = vmatpush1.msra.mxu0 %v2320
        %2388 = vmatprep.mubr.f32.mxu0 %v1158
        %2389 = vmatmul.mubr.f32.gmra.mrb[0].mxu0 %v1157
        %v2390 = vpop.f32.mrb[0].mxu0
        %v2391 = vadd.f32 0.0, %v2390
        %v2392 = vpop.f32.mrb[0].mxu0
        %v2393 = vadd.f32 0.0, %v2392
        %2394 = vmatprep.mubr.f32.mxu0 %v1160
        %2395 = vmatmul.mubr.f32.gmra.mrb[0].mxu0 %v1159
        %v2396 = vpop.f32.mrb[0].mxu0
        %v2397 = vadd.f32 0.0, %v2396
        %v2398 = vpop.f32.mrb[0].mxu0
        %v2399 = vadd.f32 0.0, %v2398
        %2400 = vdwg.mxu0
        %2401 = vmatprep.subr.mxu0 %v2199
        %2402 = vmatpush1.msra.mxu0 %v2198
        %2403 = vmatprep.subr.mxu0 %v2203
        %2404 = vmatpush1.msra.mxu0 %v2202
        %2405 = vmatprep.subr.mxu0 %v2207
        %2406 = vmatpush1.msra.mxu0 %v2206
        %2407 = vmatprep.subr.mxu0 %v2211
        %2408 = vmatpush1.msra.mxu0 %v2210
        %2409 = vmatprep.subr.mxu0 %v2215
        %2410 = vmatpush1.msra.mxu0 %v2214
        %2411 = vmatprep.subr.mxu0 %v2219
        %2412 = vmatpush1.msra.mxu0 %v2218
        %2413 = vmatprep.subr.mxu0 %v2223
        %2414 = vmatpush1.msra.mxu0 %v2222
        %2415 = vmatprep.subr.mxu0 %v2227
        %2416 = vmatpush1.msra.mxu0 %v2226
        %2417 = vmatprep.subr.mxu0 %v2231
        %2418 = vmatpush1.msra.mxu0 %v2230
        %2419 = vmatprep.subr.mxu0 %v2235
        %2420 = vmatpush1.msra.mxu0 %v2234
        %2421 = vmatprep.subr.mxu0 %v2239
        %2422 = vmatpush1.msra.mxu0 %v2238
        %2423 = vmatprep.subr.mxu0 %v2243
        %2424 = vmatpush1.msra.mxu0 %v2242
        %2425 = vmatprep.subr.mxu0 %v2247
        %2426 = vmatpush1.msra.mxu0 %v2246
        %2427 = vmatprep.subr.mxu0 %v2251
        %2428 = vmatpush1.msra.mxu0 %v2250
        %2429 = vmatprep.subr.mxu0 %v2255
        %2430 = vmatpush1.msra.mxu0 %v2254
        %2431 = vmatprep.subr.mxu0 %v2259
        %2432 = vmatpush1.msra.mxu0 %v2258
        %2433 = vmatprep.subr.mxu0 %v2263
        %2434 = vmatpush1.msra.mxu0 %v2262
        %2435 = vmatprep.subr.mxu0 %v2267
        %2436 = vmatpush1.msra.mxu0 %v2266
        %2437 = vmatprep.subr.mxu0 %v2271
        %2438 = vmatpush1.msra.mxu0 %v2270
        %2439 = vmatprep.subr.mxu0 %v2275
        %2440 = vmatpush1.msra.mxu0 %v2274
        %2441 = vmatprep.subr.mxu0 %v2279
        %2442 = vmatpush1.msra.mxu0 %v2278
        %2443 = vmatprep.subr.mxu0 %v2283
        %2444 = vmatpush1.msra.mxu0 %v2282
        %2445 = vmatprep.subr.mxu0 %v2287
        %2446 = vmatpush1.msra.mxu0 %v2286
        %2447 = vmatprep.subr.mxu0 %v2291
        %2448 = vmatpush1.msra.mxu0 %v2290
        %2449 = vmatprep.subr.mxu0 %v2295
        %2450 = vmatpush1.msra.mxu0 %v2294
        %2451 = vmatprep.subr.mxu0 %v2299
        %2452 = vmatpush1.msra.mxu0 %v2298
        %2453 = vmatprep.subr.mxu0 %v2303
        %2454 = vmatpush1.msra.mxu0 %v2302
        %2455 = vmatprep.subr.mxu0 %v2307
        %2456 = vmatpush1.msra.mxu0 %v2306
        %2457 = vmatprep.subr.mxu0 %v2311
        %2458 = vmatpush1.msra.mxu0 %v2310
        %2459 = vmatprep.subr.mxu0 %v2315
        %2460 = vmatpush1.msra.mxu0 %v2314
        %2461 = vmatprep.subr.mxu0 %v2319
        %2462 = vmatpush1.msra.mxu0 %v2318
        %2463 = vmatprep.subr.mxu0 %v2323
        %2464 = vmatpush1.msra.mxu0 %v2322
        %2465 = vmatprep.mubr.f32.mxu0 %v1158
        %2466 = vmatmul.mubr.f32.gmra.mrb[0].mxu0 %v1157
        %v2467 = vpop.f32.mrb[0].mxu0
        %v2468 = vadd.f32 0.0, %v2467
        %v2469 = vpop.f32.mrb[0].mxu0
        %v2470 = vadd.f32 0.0, %v2469
        %2471 = vmatprep.mubr.f32.mxu0 %v1160
        %2472 = vmatmul.mubr.f32.gmra.mrb[0].mxu0 %v1159
        %v2473 = vpop.f32.mrb[0].mxu0
        %v2474 = vadd.f32 0.0, %v2473
        %v2475 = vpop.f32.mrb[0].mxu0
        %v2476 = vadd.f32 0.0, %v2475
        %2477 = vdwg.mxu0
        %v2478 = vsel %vm1191, %v2391, 0.0
        %v2479 = vsel %vm1192, %v2393, 0.0
        %v2480 = vsel %vm1193, %v2468, 0.0
        %v2481 = vsel %vm1194, %v2470, 0.0
        %v2482 = vsel %vm1195, %v2397, 0.0
        %v2483 = vsel %vm1196, %v2399, 0.0
        %v2484 = vsel %vm1197, %v2474, 0.0
        %v2485 = vsel %vm1198, %v2476, 0.0
        %v2486 = vadd.f32 %v2478, %v2482
        %v2487 = vrot.slane %v2486, 4
        %v2488 = vadd.f32 %v2486, %v2487
        %v2489 = vrot.slane %v2488, 2
        %v2490 = vadd.f32 %v2488, %v2489
        %v2491 = vrot.slane %v2490, 1
        %v2492 = vadd.f32 %v2490, %v2491
        %v2493 = vadd.f32 %v2479, %v2483
        %v2494 = vrot.slane %v2493, 4
        %v2495 = vadd.f32 %v2493, %v2494
        %v2496 = vrot.slane %v2495, 2
        %v2497 = vadd.f32 %v2495, %v2496
        %v2498 = vrot.slane %v2497, 1
        %v2499 = vadd.f32 %v2497, %v2498
        %v2500 = vadd.f32 %v2480, %v2484
        %v2501 = vrot.slane %v2500, 4
        %v2502 = vadd.f32 %v2500, %v2501
        %v2503 = vrot.slane %v2502, 2
        %v2504 = vadd.f32 %v2502, %v2503
        %v2505 = vrot.slane %v2504, 1
        %v2506 = vadd.f32 %v2504, %v2505
        %v2507 = vadd.f32 %v2481, %v2485
        %v2508 = vrot.slane %v2507, 4
        %v2509 = vadd.f32 %v2507, %v2508
        %v2510 = vrot.slane %v2509, 2
        %v2511 = vadd.f32 %v2509, %v2510
        %v2512 = vrot.slane %v2511, 1
        %v2513 = vadd.f32 %v2511, %v2512
        %v2514 = vadd.f32 %v2492, %v2506
        %v2515 = vadd.f32 %v2499, %v2513
        %v2516 = vadd.f32 %v2514, %v2515
        %2518 = vrot.lane.b32.xlu0 %v2516, 64
        %v2519 = vpop.permute.xlu0 %2518
        %v2521 = vadd.f32 %v2516, %v2519
        %2523 = vrot.lane.b32.xlu0 %v2521, 96
        %v2524 = vpop.permute.xlu0 %2523
        %v2526 = vadd.f32 %v2521, %v2524
        %v2527 = vadd.f32 %v2195, %v2526
        %vm2528 = vcmask 253952
        %2529 = vst.msk [vmem:[%s312] sm:$0x1] %vm2528, %v2527
        %s2530 = sand.u32 %s183, 1
        %s2531 = scalar_lea.sflag [#allocation4], %s2530
        %s2532 = sand.u32 %s183, 1
        %s2533 = scalar_lea.vmem [#allocation8], %s2532
        // Predicated region
        $region61: #{feature_flat_forward.1} parent=47 // pred_check
          %p2534 = pneg %p193
        $region62: #{feature_flat_forward.1} parent=47 // pred_check_branch
          %2536 = sbr.rel (%p2534) target = $region64
        $region63: #{feature_flat_forward.1} parent=47 // pred_region
          %s2538 = ssub.s32 16, 16
          %2539 = vsyncadd %s2531, %s2538
          %s2540 = smul.addr %s23, 16
          %s2541 = scalar_lea.hbm %s7, %s2540
          %s2543 = sshll.u32 %s2533, 4
          %s2544 = int_to_ptr.vmem [resolvable:$true] %s2543
          %2546 = dma.vmem_to_hbm [thread:$0]  %s2544, 16, %s2541, %s2531
        $region64: #{feature_flat_forward.1} parent=47 // pred_fallthru
          _
      $region48: #{feature_flat_forward.1} parent=5 // pred_fallthru
        _
      %p2547 = scmp.le.s32.totalorder 2, %s18
      // Predicated region
      $region65: #{feature_flat_forward.1} parent=5 // pred_check
        %p2548 = pneg %p2547
      $region66: #{feature_flat_forward.1} parent=5 // pred_check_branch
        %2550 = sbr.rel (%p2548) target = $region68
      $region67: #{feature_flat_forward.1} parent=5 // pred_region
        %s2551 = ssub.s32 %s18, 2
        // Predicated region
        $region69: #{feature_flat_forward.1} parent=67 // pred_check
          %p2552 = pneg %p199
        $region70: #{feature_flat_forward.1} parent=67 // pred_check_branch
          %2554 = sbr.rel (%p2552) target = $region72
        $region71: #{feature_flat_forward.1} parent=67 // pred_region
          %s2555 = sand.u32 %s184, 1
          %s2556 = scalar_lea.sflag [#allocation4], %s2555
          %s2557 = sand.u32 %s184, 1
          %s2558 = scalar_lea.vmem [#allocation8], %s2557
          %2559 = dma.done %s2556, 16
        $region72: #{feature_flat_forward.1} parent=67 // pred_fallthru
          _
      $region68: #{feature_flat_forward.1} parent=5 // pred_fallthru
        _
    $region6: #{feature_flat_forward.1} parent=1 // loop_footer
      %s22 = sadd.s32 1, %s18
    $region7: #{feature_flat_forward.1} parent=1 // loop_footer_branch
      %17 = sbr.rel target = $region3
    $region8: #{feature_flat_forward.1} parent=1 // loop_exit
      _
    %2560 = vsyncpa [#allocation3], 1
    %s2561 = scalar_lea.sflag [#allocation3], 1
    %2562 = vsyncpa %s2561, 1
    %2563 = vsyncpa [#allocation6], 1
    %2564 = vsyncpa [#allocation4], 1
    %s2565 = scalar_lea.sflag [#allocation4], 1
    %2566 = vsyncpa %s2565, 1

</llo_original>
